<compile_context>
chip_gen: v7x
topology: tpu7x:2x2x1
jax: 0.10.0
libtpu: 0.0.40
codegen_flags: <defaults>
</compile_context>

<pallas_src>
import jax
import jax.numpy as jnp
from jax import lax
from jax.experimental import pallas as pl
from jax.experimental.pallas import tpu as pltpu

NUM_GROUPS = 32
EPS = 1e-6


def _attn_block_kernel(x_ref,            # (1, HW, C)  f32, resident per batch
                       g_ref, b_ref,     # (1, C) f32 gamma / beta
                       m_ref,            # (C, C) f32 group-mean matrix (1/(HW*cpg) blocks)
                       wqkv_ref,         # (C, 3C) bf16 (wq pre-scaled by C^-0.5)
                       bqkv_ref,         # (1, 3C) f32  (bq pre-scaled by C^-0.5)
                       wp_ref, bp_ref,   # (C, C) bf16 / (1, C) f32
                       o_ref,            # (1, TQ, C) f32
                       qkv_scr):         # (HW, 3C) bf16 scratch
    f32 = jnp.float32
    bf16 = jnp.bfloat16
    C = wp_ref.shape[0]
    TQ = o_ref.shape[1]
    qi = pl.program_id(1)

    # ---- per-batch precompute: GroupNorm(32) + fused (scaled) QKV ----
    @pl.when(qi == 0)
    def _():
        x = x_ref[0].astype(f32)                                          # (HW, C)
        s = jnp.sum(x, axis=0, keepdims=True)                             # (1, C)
        mean_c = jnp.dot(s, m_ref[...], preferred_element_type=f32)       # (1, C)
        xc = x - mean_c
        sq = jnp.sum(xc * xc, axis=0, keepdims=True)                      # (1, C)
        inv_c = lax.rsqrt(jnp.dot(sq, m_ref[...],
                                  preferred_element_type=f32) + EPS)      # (1, C)
        hn = xc * (inv_c * g_ref[...]) + b_ref[...]                       # (HW, C) f32
        qkv = jnp.dot(hn.astype(bf16), wqkv_ref[...],
                      preferred_element_type=f32) + bqkv_ref[...]         # (HW, 3C) f32
        qkv_scr[...] = qkv.astype(bf16)

    # ---- per-q-tile attention + proj_out + residual ----
    row0 = pl.multiple_of(qi * TQ, TQ)
    q = qkv_scr[pl.ds(row0, TQ), 0:C]                                     # (TQ, C) bf16
    k = qkv_scr[:, C:2 * C]                                               # (HW, C) bf16
    v = qkv_scr[:, 2 * C:3 * C]                                           # (HW, C) bf16

    scores = lax.dot_general(q, k,
                             dimension_numbers=(((1,), (1,)), ((), ())),
                             preferred_element_type=f32)                  # (TQ, HW)
    m = jnp.max(scores, axis=-1, keepdims=True)
    p = jnp.exp(scores - m)                                               # (TQ, HW) f32
    l = jnp.sum(p, axis=-1, keepdims=True)                                # (TQ, 1)  f32
    ctx = jnp.dot(p.astype(bf16), v, preferred_element_type=f32)          # (TQ, C)
    ctx = ctx * pl.reciprocal(l, approx=True)                             # deferred 1/l
    h_out = jnp.dot(ctx.astype(bf16), wp_ref[...],
                    preferred_element_type=f32) + bp_ref[...]             # (TQ, C)

    x_tile = x_ref[0, pl.ds(row0, TQ), :].astype(f32)
    o_ref[0] = (x_tile + h_out).astype(o_ref.dtype)


def _group_mean_matrix(C, HW):
    """Block-diagonal (C,C) f32 matrix: M[c,c'] = 1/(HW*cpg) iff same group."""
    cpg = C // NUM_GROUPS
    gid = jnp.arange(C) // cpg
    same = (gid[:, None] == gid[None, :]).astype(jnp.float32)
    return same / float(HW * cpg)


def attn_block_pallas(x_nchw, p, *, tq=256):
    """x_nchw: (N, C, H, W), PyTorch layout.  Weights are (C_in, C_out) matrices
    (a PyTorch Conv2d 1x1 weight (C_out, C_in, 1, 1) maps to w[:, :, 0, 0].T)."""
    N, C, H, W = x_nchw.shape
    HW = H * W
    assert C % NUM_GROUPS == 0
    tq = min(tq, HW)
    if HW % tq != 0:
        tq = HW
    bf16 = jnp.bfloat16
    f32 = jnp.float32

    # channels-last inside the kernel: C -> 128-lane axis, HW -> sublanes
    x2 = jnp.transpose(x_nchw.reshape(N, C, HW), (0, 2, 1))               # (N, HW, C)

    scale = float(C) ** -0.5
    wqkv = jnp.concatenate([p["wq"] * scale, p["wk"], p["wv"]], axis=1).astype(bf16)
    bqkv = jnp.concatenate([p["bq"] * scale, p["bk"], p["bv"]]
                           ).reshape(1, 3 * C).astype(f32)
    mmat = _group_mean_matrix(C, HW)

    row = lambda v: v.reshape(1, -1).astype(f32)
    inputs = (
        x2,
        row(p["gamma"]), row(p["beta"]),
        mmat,
        wqkv, bqkv,
        p["wp"].astype(bf16), row(p["bp"]),
    )

    def const_spec(arr):
        nd = arr.ndim
        return pl.BlockSpec(arr.shape, lambda n, qi, _nd=nd: (0,) * _nd)

    in_specs = [pl.BlockSpec((1, HW, C), lambda n, qi: (n, 0, 0))] + \
               [const_spec(a) for a in inputs[1:]]
    out_spec = pl.BlockSpec((1, tq, C), lambda n, qi: (n, qi, 0))

    out = pl.pallas_call(
        _attn_block_kernel,
        out_shape=jax.ShapeDtypeStruct((N, HW, C), f32),
        grid_spec=pltpu.PrefetchScalarGridSpec(
            num_scalar_prefetch=0,
            grid=(N, HW // tq),
            in_specs=in_specs,
            out_specs=out_spec,
            scratch_shapes=[pltpu.VMEM((HW, 3 * C), bf16)],
        ),
        compiler_params=pltpu.CompilerParams(
            dimension_semantics=("parallel", "arbitrary")),
    )(*inputs)
    return jnp.transpose(out, (0, 2, 1)).reshape(N, C, H, W)


# ---------------------- pure-JAX reference (for checking) ----------------------
def _group_norm_ref(x, gamma, beta):
    N, C, H, W = x.shape
    G = NUM_GROUPS
    xg = x.reshape(N, G, C // G, H, W)
    mean = xg.mean(axis=(2, 3, 4), keepdims=True)
    var = xg.var(axis=(2, 3, 4), keepdims=True)
    xn = ((xg - mean) / jnp.sqrt(var + EPS)).reshape(N, C, H, W)
    return xn * gamma.reshape(1, C, 1, 1) + beta.reshape(1, C, 1, 1)


def attn_block_ref(x, p):
    N, C, H, W = x.shape
    hn = _group_norm_ref(x, p["gamma"], p["beta"])
    hn2 = jnp.transpose(hn.reshape(N, C, H * W), (0, 2, 1))               # (N, HW, C)
    q = hn2 @ p["wq"] + p["bq"]
    k = hn2 @ p["wk"] + p["bk"]
    v = hn2 @ p["wv"] + p["bv"]
    scores = jnp.einsum("nic,njc->nij", q, k) * (C ** -0.5)
    attn = jax.nn.softmax(scores, axis=-1)
    ctx = jnp.einsum("nij,njc->nic", attn, v)
    out = ctx @ p["wp"] + p["bp"]                                         # (N, HW, C)
    return x + jnp.transpose(out, (0, 2, 1)).reshape(N, C, H, W)


def init_params(key, C):
    ks = jax.random.split(key, 10)
    s = 0.05
    f32 = jnp.float32
    return dict(
        gamma=1.0 + 0.1 * jax.random.normal(ks[0], (C,), f32),
        beta=0.1 * jax.random.normal(ks[1], (C,), f32),
        wq=s * jax.random.normal(ks[2], (C, C), f32),
        bq=s * jax.random.normal(ks[3], (C,), f32),
        wk=s * jax.random.normal(ks[4], (C, C), f32),
        bk=s * jax.random.normal(ks[5], (C,), f32),
        wv=s * jax.random.normal(ks[6], (C, C), f32),
        bv=s * jax.random.normal(ks[7], (C,), f32),
        wp=s * jax.random.normal(ks[8], (C, C), f32),
        bp=s * jax.random.normal(ks[9], (C,), f32),
    )


if __name__ == "__main__":
    # GroupNorm(32) requires channels % 32 == 0; C=128 keeps every matmul and
    # every store lane-dense.  PyTorch NCHW layout: (2, 128, 16, 16).
    N, C, H, W = 2, 128, 16, 16

    key = jax.random.PRNGKey(0)
    kx, kp = jax.random.split(key)
    x = jax.random.normal(kx, (N, C, H, W), jnp.float32)
    params = init_params(kp, C)

    # tq=128 -> 2 q-row tiles per batch element (exercises the tiled path).
    out = jax.block_until_ready(attn_block_pallas(x, params, tq=128))
    ref = jax.block_until_ready(attn_block_ref(x, params))

    max_err = float(jnp.max(jnp.abs(out - ref)))
    assert out.shape == (N, C, H, W)
    assert max_err < 2e-2, f"mismatch vs reference, max abs err = {max_err}"

    print("KERNEL_OK")
</pallas_src>

<mosaic_0001>
module attributes {stable_mosaic.version = 11 : i64} {
  func.func @_attn_block_kernel(%arg0: i32, %arg1: i32, %arg2: memref<1x256x128xf32, #tpu.memory_space<vmem>>, %arg3: memref<1x128xf32, #tpu.memory_space<vmem>>, %arg4: memref<1x128xf32, #tpu.memory_space<vmem>>, %arg5: memref<128x128xf32, #tpu.memory_space<vmem>>, %arg6: memref<128x384xbf16, #tpu.memory_space<vmem>>, %arg7: memref<1x384xf32, #tpu.memory_space<vmem>>, %arg8: memref<128x128xbf16, #tpu.memory_space<vmem>>, %arg9: memref<1x128xf32, #tpu.memory_space<vmem>>, %arg10: memref<1x128x128xf32, #tpu.memory_space<vmem>>, %arg11: memref<256x384xbf16, #tpu.memory_space<vmem>>) attributes {dimension_semantics = [#tpu.dimension_semantics<parallel>, #tpu.dimension_semantics<arbitrary>], iteration_bounds = array<i64: 2, 2>, scalar_prefetch = 0 : i64, scratch_operands = 1 : i64, tpu.core_type = #tpu.core_type<tc>, window_params = [{transform_indices = @transform_0, window_bounds = array<i64: 1, 256, 128>}, {pipeline_mode = #tpu.pipeline_mode<synchronous>, transform_indices = @transform_1, window_bounds = array<i64: 1, 128>}, {pipeline_mode = #tpu.pipeline_mode<synchronous>, transform_indices = @transform_2, window_bounds = array<i64: 1, 128>}, {pipeline_mode = #tpu.pipeline_mode<synchronous>, transform_indices = @transform_3, window_bounds = array<i64: 128, 128>}, {pipeline_mode = #tpu.pipeline_mode<synchronous>, transform_indices = @transform_4, window_bounds = array<i64: 128, 384>}, {pipeline_mode = #tpu.pipeline_mode<synchronous>, transform_indices = @transform_5, window_bounds = array<i64: 1, 384>}, {pipeline_mode = #tpu.pipeline_mode<synchronous>, transform_indices = @transform_6, window_bounds = array<i64: 128, 128>}, {pipeline_mode = #tpu.pipeline_mode<synchronous>, transform_indices = @transform_7, window_bounds = array<i64: 1, 128>}, {transform_indices = @transform_8, window_bounds = array<i64: 1, 128, 128>}]} {
    %c0_i32 = arith.constant 0 : i32
    %0 = arith.cmpi eq, %arg1, %c0_i32 : i32
    %1 = arith.extui %0 : i1 to i32
    %c0_i32_0 = arith.constant 0 : i32
    %2 = arith.cmpi ne, %1, %c0_i32_0 : i32
    scf.if %2 {
      %c0_16 = arith.constant 0 : index
      %c0_17 = arith.constant 0 : index
      %c0_18 = arith.constant 0 : index
      %35 = vector.load %arg2[%c0_16, %c0_17, %c0_18] : memref<1x256x128xf32, #tpu.memory_space<vmem>>, vector<1x256x128xf32>
      %36 = vector.shape_cast %35 : vector<1x256x128xf32> to vector<256x128xf32>
      %cst_19 = arith.constant dense<0.000000e+00> : vector<128xf32>
      %37 = vector.multi_reduction <add>, %36, %cst_19 [0] : vector<256x128xf32> to vector<128xf32>
      %38 = vector.shape_cast %37 : vector<128xf32> to vector<1x128xf32>
      %c0_20 = arith.constant 0 : index
      %c0_21 = arith.constant 0 : index
      %39 = vector.load %arg5[%c0_20, %c0_21] : memref<128x128xf32, #tpu.memory_space<vmem>>, vector<128x128xf32>
      %cst_22 = arith.constant dense<0.000000e+00> : vector<1x128xf32>
      %40 = tpu.matmul %38, %39, %cst_22 {dimension_numbers = #tpu.dot_dimension_numbers<[1], [0], [0], [1], [0, 0, 1, 1], [], []>} : vector<1x128xf32>, vector<128x128xf32>, vector<1x128xf32> -> vector<1x128xf32>
      %41 = vector.broadcast %40 : vector<1x128xf32> to vector<256x128xf32>
      %42 = arith.subf %36, %41 : vector<256x128xf32>
      %43 = arith.mulf %42, %42 : vector<256x128xf32>
      %cst_23 = arith.constant dense<0.000000e+00> : vector<128xf32>
      %44 = vector.multi_reduction <add>, %43, %cst_23 [0] : vector<256x128xf32> to vector<128xf32>
      %45 = vector.shape_cast %44 : vector<128xf32> to vector<1x128xf32>
      %c0_24 = arith.constant 0 : index
      %c0_25 = arith.constant 0 : index
      %46 = vector.load %arg5[%c0_24, %c0_25] : memref<128x128xf32, #tpu.memory_space<vmem>>, vector<128x128xf32>
      %cst_26 = arith.constant dense<0.000000e+00> : vector<1x128xf32>
      %47 = tpu.matmul %45, %46, %cst_26 {dimension_numbers = #tpu.dot_dimension_numbers<[1], [0], [0], [1], [0, 0, 1, 1], [], []>} : vector<1x128xf32>, vector<128x128xf32>, vector<1x128xf32> -> vector<1x128xf32>
      %cst_27 = arith.constant 9.99999997E-7 : f32
      %48 = vector.broadcast %cst_27 : f32 to vector<1x128xf32>
      %49 = arith.addf %47, %48 : vector<1x128xf32>
      %50 = math.rsqrt %49 : vector<1x128xf32>
      %c0_28 = arith.constant 0 : index
      %c0_29 = arith.constant 0 : index
      %51 = vector.load %arg3[%c0_28, %c0_29] : memref<1x128xf32, #tpu.memory_space<vmem>>, vector<1x128xf32>
      %52 = arith.mulf %50, %51 : vector<1x128xf32>
      %53 = vector.broadcast %52 : vector<1x128xf32> to vector<256x128xf32>
      %54 = arith.mulf %42, %53 : vector<256x128xf32>
      %c0_30 = arith.constant 0 : index
      %c0_31 = arith.constant 0 : index
      %55 = vector.load %arg4[%c0_30, %c0_31] : memref<1x128xf32, #tpu.memory_space<vmem>>, vector<1x128xf32>
      %56 = vector.broadcast %55 : vector<1x128xf32> to vector<256x128xf32>
      %57 = arith.addf %54, %56 : vector<256x128xf32>
      %58 = arith.truncf %57 : vector<256x128xf32> to vector<256x128xbf16>
      %c0_32 = arith.constant 0 : index
      %c0_33 = arith.constant 0 : index
      %59 = vector.load %arg6[%c0_32, %c0_33] : memref<128x384xbf16, #tpu.memory_space<vmem>>, vector<128x384xbf16>
      %cst_34 = arith.constant dense<0.000000e+00> : vector<256x384xf32>
      %60 = tpu.matmul %58, %59, %cst_34 {dimension_numbers = #tpu.dot_dimension_numbers<[1], [0], [0], [1], [0, 0, 1, 1], [], []>} : vector<256x128xbf16>, vector<128x384xbf16>, vector<256x384xf32> -> vector<256x384xf32>
      %c0_35 = arith.constant 0 : index
      %c0_36 = arith.constant 0 : index
      %61 = vector.load %arg7[%c0_35, %c0_36] : memref<1x384xf32, #tpu.memory_space<vmem>>, vector<1x384xf32>
      %62 = vector.broadcast %61 : vector<1x384xf32> to vector<256x384xf32>
      %63 = arith.addf %60, %62 : vector<256x384xf32>
      %64 = arith.truncf %63 : vector<256x384xf32> to vector<256x384xbf16>
      %c0_37 = arith.constant 0 : index
      %c0_38 = arith.constant 0 : index
      %65 = vector.load %arg11[%c0_37, %c0_38] : memref<256x384xbf16, #tpu.memory_space<vmem>>, vector<256x384xbf16>
      tpu.vector_store %arg11[%c0_37, %c0_38], %64 {strides = array<i32>} : memref<256x384xbf16, #tpu.memory_space<vmem>>, vector<256x384xbf16>,
    } else {
    }
    %c128_i32 = arith.constant 128 : i32
    %3 = arith.muli %arg1, %c128_i32 : i32
    %4 = tpu.assume_multiple %3, 128 : i32
    %5 = arith.index_cast %4 : i32 to index
    %c0 = arith.constant 0 : index
    %6 = vector.load %arg11[%5, %c0] : memref<256x384xbf16, #tpu.memory_space<vmem>>, vector<128x128xbf16>
    %c0_1 = arith.constant 0 : index
    %c128 = arith.constant 128 : index
    %7 = vector.load %arg11[%c0_1, %c128] : memref<256x384xbf16, #tpu.memory_space<vmem>>, vector<256x128xbf16>
    %c0_2 = arith.constant 0 : index
    %c256 = arith.constant 256 : index
    %8 = vector.load %arg11[%c0_2, %c256] : memref<256x384xbf16, #tpu.memory_space<vmem>>, vector<256x128xbf16>
    %cst = arith.constant dense<0.000000e+00> : vector<128x256xf32>
    %9 = tpu.matmul %6, %7, %cst {dimension_numbers = #tpu.dot_dimension_numbers<[1], [1], [0], [0], [0, 0, 1, 0], [], []>} : vector<128x128xbf16>, vector<256x128xbf16>, vector<128x256xf32> -> vector<128x256xf32>
    %cst_3 = arith.constant dense<0xFF800000> : vector<128xf32>
    %10 = vector.multi_reduction <maximumf>, %9, %cst_3 [1] : vector<128x256xf32> to vector<128xf32>
    %11 = vector.shape_cast %10 : vector<128xf32> to vector<128x1xf32>
    %12 = vector.broadcast %11 : vector<128x1xf32> to vector<128x256xf32>
    %13 = arith.subf %9, %12 : vector<128x256xf32>
    %14 = math.exp %13 : vector<128x256xf32>
    %cst_4 = arith.constant dense<0.000000e+00> : vector<128xf32>
    %15 = vector.multi_reduction <add>, %14, %cst_4 [1] : vector<128x256xf32> to vector<128xf32>
    %16 = vector.shape_cast %15 : vector<128xf32> to vector<128x1xf32>
    %17 = arith.truncf %14 : vector<128x256xf32> to vector<128x256xbf16>
    %cst_5 = arith.constant dense<0.000000e+00> : vector<128x128xf32>
    %18 = tpu.matmul %17, %8, %cst_5 {dimension_numbers = #tpu.dot_dimension_numbers<[1], [0], [0], [1], [0, 0, 1, 1], [], []>} : vector<128x256xbf16>, vector<256x128xbf16>, vector<128x128xf32> -> vector<128x128xf32>
    %19 = tpu.reciprocal %16 {approx = true} : vector<128x1xf32> -> vector<128x1xf32>
    %20 = vector.broadcast %19 : vector<128x1xf32> to vector<128x128xf32>
    %21 = arith.mulf %18, %20 : vector<128x128xf32>
    %22 = arith.truncf %21 : vector<128x128xf32> to vector<128x128xbf16>
    %c0_6 = arith.constant 0 : index
    %c0_7 = arith.constant 0 : index
    %23 = vector.load %arg8[%c0_6, %c0_7] : memref<128x128xbf16, #tpu.memory_space<vmem>>, vector<128x128xbf16>
    %cst_8 = arith.constant dense<0.000000e+00> : vector<128x128xf32>
    %24 = tpu.matmul %22, %23, %cst_8 {dimension_numbers = #tpu.dot_dimension_numbers<[1], [0], [0], [1], [0, 0, 1, 1], [], []>} : vector<128x128xbf16>, vector<128x128xbf16>, vector<128x128xf32> -> vector<128x128xf32>
    %c0_9 = arith.constant 0 : index
    %c0_10 = arith.constant 0 : index
    %25 = vector.load %arg9[%c0_9, %c0_10] : memref<1x128xf32, #tpu.memory_space<vmem>>, vector<1x128xf32>
    %26 = vector.broadcast %25 : vector<1x128xf32> to vector<128x128xf32>
    %27 = arith.addf %24, %26 : vector<128x128xf32>
    %c0_11 = arith.constant 0 : index
    %28 = arith.index_cast %4 : i32 to index
    %c0_12 = arith.constant 0 : index
    %29 = vector.load %arg2[%c0_11, %28, %c0_12] : memref<1x256x128xf32, #tpu.memory_space<vmem>>, vector<1x128x128xf32>
    %30 = vector.shape_cast %29 : vector<1x128x128xf32> to vector<128x128xf32>
    %31 = arith.addf %30, %27 : vector<128x128xf32>
    %c0_13 = arith.constant 0 : index
    %c0_14 = arith.constant 0 : index
    %c0_15 = arith.constant 0 : index
    %32 = vector.load %arg10[%c0_13, %c0_14, %c0_15] : memref<1x128x128xf32, #tpu.memory_space<vmem>>, vector<1x128x128xf32>
    %33 = vector.shape_cast %32 : vector<1x128x128xf32> to vector<128x128xf32>
    %34 = vector.shape_cast %31 : vector<128x128xf32> to vector<1x128x128xf32>
    tpu.vector_store %arg10[%c0_13, %c0_14, %c0_15], %34 {strides = array<i32>} : memref<1x128x128xf32, #tpu.memory_space<vmem>>, vector<1x128x128xf32>,
    return
  }
  func.func @transform_0(%arg0: i32, %arg1: i32) -> (i32, i32, i32) {
    %c0_i32 = arith.constant 0 : i32
    %c0_i32_0 = arith.constant 0 : i32
    %c0_i32_1 = arith.constant 0 : i32
    return %arg0, %c0_i32, %c0_i32_0 : i32, i32, i32
  }
  func.func @transform_1(%arg0: i32, %arg1: i32) -> (i32, i32) {
    %c0_i32 = arith.constant 0 : i32
    %c0_i32_0 = arith.constant 0 : i32
    %c0_i32_1 = arith.constant 0 : i32
    return %c0_i32, %c0_i32_0 : i32, i32
  }
  func.func @transform_2(%arg0: i32, %arg1: i32) -> (i32, i32) {
    %c0_i32 = arith.constant 0 : i32
    %c0_i32_0 = arith.constant 0 : i32
    %c0_i32_1 = arith.constant 0 : i32
    return %c0_i32, %c0_i32_0 : i32, i32
  }
  func.func @transform_3(%arg0: i32, %arg1: i32) -> (i32, i32) {
    %c0_i32 = arith.constant 0 : i32
    %c0_i32_0 = arith.constant 0 : i32
    %c0_i32_1 = arith.constant 0 : i32
    return %c0_i32, %c0_i32_0 : i32, i32
  }
  func.func @transform_4(%arg0: i32, %arg1: i32) -> (i32, i32) {
    %c0_i32 = arith.constant 0 : i32
    %c0_i32_0 = arith.constant 0 : i32
    %c0_i32_1 = arith.constant 0 : i32
    return %c0_i32, %c0_i32_0 : i32, i32
  }
  func.func @transform_5(%arg0: i32, %arg1: i32) -> (i32, i32) {
    %c0_i32 = arith.constant 0 : i32
    %c0_i32_0 = arith.constant 0 : i32
    %c0_i32_1 = arith.constant 0 : i32
    return %c0_i32, %c0_i32_0 : i32, i32
  }
  func.func @transform_6(%arg0: i32, %arg1: i32) -> (i32, i32) {
    %c0_i32 = arith.constant 0 : i32
    %c0_i32_0 = arith.constant 0 : i32
    %c0_i32_1 = arith.constant 0 : i32
    return %c0_i32, %c0_i32_0 : i32, i32
  }
  func.func @transform_7(%arg0: i32, %arg1: i32) -> (i32, i32) {
    %c0_i32 = arith.constant 0 : i32
    %c0_i32_0 = arith.constant 0 : i32
    %c0_i32_1 = arith.constant 0 : i32
    return %c0_i32, %c0_i32_0 : i32, i32
  }
  func.func @transform_8(%arg0: i32, %arg1: i32) -> (i32, i32, i32) {
    %c0_i32 = arith.constant 0 : i32
    %c0_i32_0 = arith.constant 0 : i32
    return %arg0, %arg1, %c0_i32 : i32, i32, i32
  }
}

</mosaic_0001>

<llo_original>
// kernel: tpu_custom_call.1
$region0: #{tpu_custom_call.1}
  #allocation0 [shape = 'u32[]', space=smem, size = 0x4, offset = 0x4, fixed_abs, tag = 'smem constant byte address 0x4 - core index']
  #allocation1 [shape = 'u32[144,128]{1,0:T(1,128)}', space=vmem, size = 0x12000, scoped, tag = 'internal scratch']
  #allocation2 [shape = 'bf16[256,384]{1,0:T(16,128)(2,1)}', space=vmem, size = 0x30000, scoped, tag = 'scratch operand']
  %s0 = inlined_call_operand.hbm [shape: f32[2,256,128], index: 0, kind: input, shape index: {}]
  %s1 = inlined_call_operand.vmem [shape: f32[1,128], index: 1, kind: input, shape index: {}]
  %s2 = inlined_call_operand.vmem [shape: f32[1,128], index: 2, kind: input, shape index: {}]
  %s3 = inlined_call_operand.hbm [shape: f32[128,128], index: 3, kind: input, shape index: {}]
  %s4 = inlined_call_operand.hbm [shape: bf16[128,384], index: 4, kind: input, shape index: {}]
  %s5 = inlined_call_operand.vmem [shape: f32[1,384], index: 5, kind: input, shape index: {}]
  %s6 = inlined_call_operand.hbm [shape: bf16[128,128], index: 6, kind: input, shape index: {}]
  %s7 = inlined_call_operand.vmem [shape: f32[1,128], index: 7, kind: input, shape index: {}]
  %s8 = inlined_call_operand.hbm [shape: f32[2,256,128], index: 8, kind: output, shape index: {}]
  %s9 = sld [smem:[#allocation0]]
  $region85: #{tpu_custom_call.1} parent=0
    _
  %s11 = ssub.s32 1, %s9
  %s12 = scalar_select 0, %s11, %s9
  $region1: #{tpu_custom_call.1} parent=0
    #allocation3 [shape = 'u8[262144]{0}', space=vmem, size = 0x40000, scoped, tag = 'input window, operand 0']
    #allocation4 [shape = 's32[2]{0}', space=sflag, size = 0x8, scoped, tag = 'scoped memory for tpu_custom_call.1']
    #allocation5 [shape = 's32[2]{0}', space=sflag, size = 0x8, scoped, tag = 'scoped memory for tpu_custom_call.1']
    #allocation6 [shape = 'u8[65536]{0}', space=vmem, size = 0x10000, scoped, tag = 'input window, operand 3, single buffered']
    #allocation7 [shape = 's32[1]{0}', space=sflag, size = 0x4, scoped, tag = 'scoped memory for tpu_custom_call.1']
    #allocation8 [shape = 'u8[98304]{0}', space=vmem, size = 0x18000, scoped, tag = 'input window, operand 4, single buffered']
    #allocation9 [shape = 'u8[32768]{0}', space=vmem, size = 0x8000, scoped, tag = 'input window, operand 6, single buffered']
    #allocation10 [shape = 's32[1]{0}', space=sflag, size = 0x4, scoped, tag = 'scoped memory for tpu_custom_call.1']
    #allocation11 [shape = 'u8[131072]{0}', space=vmem, size = 0x20000, scoped, tag = 'output window, operand 0']
    %13 = vsyncpa [#allocation4], 0
    %s14 = scalar_lea.sflag [#allocation4], 1
    %15 = vsyncpa %s14, 0
    %16 = vsyncpa [#allocation7], 0
    %17 = vsyncpa [#allocation10], 0
    %18 = vsyncpa [#allocation5], 0
    %s19 = scalar_lea.sflag [#allocation5], 1
    %20 = vsyncpa %s19, 0
    loop: start=0, step=1, limit=6
    $region2: #{tpu_custom_call.1} parent=1 // loop_pre_header
      _
    $region3: #{tpu_custom_call.1} parent=1 // loop_header
      %s22 = sphi 0, %s26
      %p23 = scmp.ge.s32.totalorder %s22, 6
      %s29 = sphi 0, %s41
      %s30 = sphi 0, %s37
      %s31 = sphi 0, %s29
      %s32 = sphi 0, %s30
      %s33 = sphi 0, %s31
      %s34 = sphi 0, %s32
      %s44 = sphi 0, %s46
      %s47 = sphi 0, %s44
      %s48 = sphi 0, %s47
      %s64 = sphi 0, %s48
      %s68 = sphi 0, %s68
      %s70 = sphi 0, %s68
      %s71 = sphi 0, %s70
      %s85 = sphi 0, %s71
      %s89 = sphi 0, %s89
      %s91 = sphi 0, %s89
      %s92 = sphi 0, %s91
      %s106 = sphi 0, %s92
      %s110 = sphi 0, %s110
      %s112 = sphi 0, %s110
      %s113 = sphi 0, %s112
      %s127 = sphi 0, %s113
      %s131 = sphi 0, %s131
      %s133 = sphi 0, %s131
      %s134 = sphi 0, %s133
      %s148 = sphi 0, %s134
      %s152 = sphi 0, %s152
      %s154 = sphi 0, %s152
      %s155 = sphi 0, %s154
      %s169 = sphi 0, %s155
      %s173 = sphi 0, %s173
      %s175 = sphi 0, %s173
      %s176 = sphi 0, %s175
      %s190 = sphi 0, %s176
      %s194 = sphi 0, %s194
      %s196 = sphi 0, %s194
      %s197 = sphi 0, %s196
      %s211 = sphi 0, %s197
      %s219 = sphi 0, %s221
      %s222 = sphi 0, %s219
      %s223 = sphi 0, %s222
      %s239 = sphi 0, %s223
    $region4: #{tpu_custom_call.1} parent=1 // loop_header_branch
      %25 = sbr.rel (%p23) target = $region8
    $region5: #{tpu_custom_call.1} parent=1 // loop_body
      %s27 = ssub.s32 %s22, 1
      %s28 = ssub.s32 %s22, 2
      %s35 = sadd.s32 1, %s30
      %p36 = scmp.ge.s32.totalorder %s35, 2
      %s37 = scalar_select %p36, 0, %s35
      %s38 = sadd.s32 1, %s29
      %s39 = scalar_select %p36, %s38, %s29
      %p40 = scmp.ge.s32.totalorder %s39, 2
      %s41 = scalar_select %p40, 0, %s39
      %s42 = ssub.s32 %s29, %s41
      %p43 = scmp.eq.s32.totalorder %s42, 0
      %s45 = sadd.s32 %s44, 1
      %s46 = scalar_select %p43, %s44, %s45
      %p49 = pneg %p43
      %p50 = scmp.eq.s32.totalorder %s22, 3
      %p51 = por %p49, %p50
      %p52 = scmp.ne.s32.totalorder %s44, %s47
      %p53 = scmp.eq.s32.totalorder %s22, 0
      %p54 = por %p52, %p53
      %p55 = scmp.ne.s32.totalorder %s44, %s47
      %p56 = scmp.eq.s32.totalorder %s27, 3
      %p57 = por %p55, %p56
      %p58 = scmp.ne.s32.totalorder %s47, %s48
      %p59 = scmp.eq.s32.totalorder %s27, 0
      %p60 = por %p58, %p59
      %p61 = scmp.ne.s32.totalorder %s47, %s48
      %p62 = scmp.eq.s32.totalorder %s28, 3
      %p63 = por %p61, %p62
      %p65 = scmp.ne.s32.totalorder %s48, %s64
      %p66 = scmp.eq.s32.totalorder %s28, 0
      %p67 = por %p65, %p66
      %s69 = sadd.s32 %s68, 1
      %p72 = scmp.eq.s32.totalorder %s22, 3
      %p73 = scmp.ne.s32.totalorder %s68, %s70
      %p74 = scmp.eq.s32.totalorder %s22, 0
      %p75 = por %p73, %p74
      %p76 = scmp.ne.s32.totalorder %s68, %s70
      %p77 = scmp.eq.s32.totalorder %s27, 3
      %p78 = por %p76, %p77
      %p79 = scmp.ne.s32.totalorder %s70, %s71
      %p80 = scmp.eq.s32.totalorder %s27, 0
      %p81 = por %p79, %p80
      %p82 = scmp.ne.s32.totalorder %s70, %s71
      %p83 = scmp.eq.s32.totalorder %s28, 3
      %p84 = por %p82, %p83
      %p86 = scmp.ne.s32.totalorder %s71, %s85
      %p87 = scmp.eq.s32.totalorder %s28, 0
      %p88 = por %p86, %p87
      %s90 = sadd.s32 %s89, 1
      %p93 = scmp.eq.s32.totalorder %s22, 3
      %p94 = scmp.ne.s32.totalorder %s89, %s91
      %p95 = scmp.eq.s32.totalorder %s22, 0
      %p96 = por %p94, %p95
      %p97 = scmp.ne.s32.totalorder %s89, %s91
      %p98 = scmp.eq.s32.totalorder %s27, 3
      %p99 = por %p97, %p98
      %p100 = scmp.ne.s32.totalorder %s91, %s92
      %p101 = scmp.eq.s32.totalorder %s27, 0
      %p102 = por %p100, %p101
      %p103 = scmp.ne.s32.totalorder %s91, %s92
      %p104 = scmp.eq.s32.totalorder %s28, 3
      %p105 = por %p103, %p104
      %p107 = scmp.ne.s32.totalorder %s92, %s106
      %p108 = scmp.eq.s32.totalorder %s28, 0
      %p109 = por %p107, %p108
      %s111 = sadd.s32 %s110, 1
      %p114 = scmp.eq.s32.totalorder %s22, 3
      %p115 = scmp.ne.s32.totalorder %s110, %s112
      %p116 = scmp.eq.s32.totalorder %s22, 0
      %p117 = por %p115, %p116
      %p118 = scmp.ne.s32.totalorder %s110, %s112
      %p119 = scmp.eq.s32.totalorder %s27, 3
      %p120 = por %p118, %p119
      %p121 = scmp.ne.s32.totalorder %s112, %s113
      %p122 = scmp.eq.s32.totalorder %s27, 0
      %p123 = por %p121, %p122
      %p124 = scmp.ne.s32.totalorder %s112, %s113
      %p125 = scmp.eq.s32.totalorder %s28, 3
      %p126 = por %p124, %p125
      %p128 = scmp.ne.s32.totalorder %s113, %s127
      %p129 = scmp.eq.s32.totalorder %s28, 0
      %p130 = por %p128, %p129
      %s132 = sadd.s32 %s131, 1
      %p135 = scmp.eq.s32.totalorder %s22, 3
      %p136 = scmp.ne.s32.totalorder %s131, %s133
      %p137 = scmp.eq.s32.totalorder %s22, 0
      %p138 = por %p136, %p137
      %p139 = scmp.ne.s32.totalorder %s131, %s133
      %p140 = scmp.eq.s32.totalorder %s27, 3
      %p141 = por %p139, %p140
      %p142 = scmp.ne.s32.totalorder %s133, %s134
      %p143 = scmp.eq.s32.totalorder %s27, 0
      %p144 = por %p142, %p143
      %p145 = scmp.ne.s32.totalorder %s133, %s134
      %p146 = scmp.eq.s32.totalorder %s28, 3
      %p147 = por %p145, %p146
      %p149 = scmp.ne.s32.totalorder %s134, %s148
      %p150 = scmp.eq.s32.totalorder %s28, 0
      %p151 = por %p149, %p150
      %s153 = sadd.s32 %s152, 1
      %p156 = scmp.eq.s32.totalorder %s22, 3
      %p157 = scmp.ne.s32.totalorder %s152, %s154
      %p158 = scmp.eq.s32.totalorder %s22, 0
      %p159 = por %p157, %p158
      %p160 = scmp.ne.s32.totalorder %s152, %s154
      %p161 = scmp.eq.s32.totalorder %s27, 3
      %p162 = por %p160, %p161
      %p163 = scmp.ne.s32.totalorder %s154, %s155
      %p164 = scmp.eq.s32.totalorder %s27, 0
      %p165 = por %p163, %p164
      %p166 = scmp.ne.s32.totalorder %s154, %s155
      %p167 = scmp.eq.s32.totalorder %s28, 3
      %p168 = por %p166, %p167
      %p170 = scmp.ne.s32.totalorder %s155, %s169
      %p171 = scmp.eq.s32.totalorder %s28, 0
      %p172 = por %p170, %p171
      %s174 = sadd.s32 %s173, 1
      %p177 = scmp.eq.s32.totalorder %s22, 3
      %p178 = scmp.ne.s32.totalorder %s173, %s175
      %p179 = scmp.eq.s32.totalorder %s22, 0
      %p180 = por %p178, %p179
      %p181 = scmp.ne.s32.totalorder %s173, %s175
      %p182 = scmp.eq.s32.totalorder %s27, 3
      %p183 = por %p181, %p182
      %p184 = scmp.ne.s32.totalorder %s175, %s176
      %p185 = scmp.eq.s32.totalorder %s27, 0
      %p186 = por %p184, %p185
      %p187 = scmp.ne.s32.totalorder %s175, %s176
      %p188 = scmp.eq.s32.totalorder %s28, 3
      %p189 = por %p187, %p188
      %p191 = scmp.ne.s32.totalorder %s176, %s190
      %p192 = scmp.eq.s32.totalorder %s28, 0
      %p193 = por %p191, %p192
      %s195 = sadd.s32 %s194, 1
      %p198 = scmp.eq.s32.totalorder %s22, 3
      %p199 = scmp.ne.s32.totalorder %s194, %s196
      %p200 = scmp.eq.s32.totalorder %s22, 0
      %p201 = por %p199, %p200
      %p202 = scmp.ne.s32.totalorder %s194, %s196
      %p203 = scmp.eq.s32.totalorder %s27, 3
      %p204 = por %p202, %p203
      %p205 = scmp.ne.s32.totalorder %s196, %s197
      %p206 = scmp.eq.s32.totalorder %s27, 0
      %p207 = por %p205, %p206
      %p208 = scmp.ne.s32.totalorder %s196, %s197
      %p209 = scmp.eq.s32.totalorder %s28, 3
      %p210 = por %p208, %p209
      %p212 = scmp.ne.s32.totalorder %s197, %s211
      %p213 = scmp.eq.s32.totalorder %s28, 0
      %p214 = por %p212, %p213
      %s215 = ssub.s32 %s29, %s41
      %s216 = ssub.s32 %s30, %s37
      %s217 = sor.u32 %s215, %s216
      %p218 = scmp.eq.s32.totalorder %s217, 0
      %s220 = sadd.s32 %s219, 1
      %s221 = scalar_select %p218, %s219, %s220
      %p224 = pneg %p218
      %p225 = scmp.eq.s32.totalorder %s22, 3
      %p226 = por %p224, %p225
      %p227 = scmp.ne.s32.totalorder %s219, %s222
      %p228 = scmp.eq.s32.totalorder %s22, 0
      %p229 = por %p227, %p228
      %p230 = scmp.ne.s32.totalorder %s219, %s222
      %p231 = scmp.eq.s32.totalorder %s27, 3
      %p232 = por %p230, %p231
      %p233 = scmp.ne.s32.totalorder %s222, %s223
      %p234 = scmp.eq.s32.totalorder %s27, 0
      %p235 = por %p233, %p234
      %p236 = scmp.ne.s32.totalorder %s222, %s223
      %p237 = scmp.eq.s32.totalorder %s28, 3
      %p238 = por %p236, %p237
      %p240 = scmp.ne.s32.totalorder %s223, %s239
      %p241 = scmp.eq.s32.totalorder %s28, 0
      %p242 = por %p240, %p241
      %p243 = scmp.le.s32.totalorder 1, %s22
      %p244 = scmp.lt.s32.totalorder %s22, 5
      %p245 = pnand %p243, %p244
      %p246 = pneg %p245
      // Predicated region
      $region9: #{tpu_custom_call.1} parent=5 // pred_check
        _
      $region10: #{tpu_custom_call.1} parent=5 // pred_check_branch
        %248 = sbr.rel (%p245) target = $region12
      $region11: #{tpu_custom_call.1} parent=5 // pred_region
        %s249 = ssub.s32 %s22, 1
        // Predicated region
        $region13: #{tpu_custom_call.1} parent=11 // pred_check
          %p250 = pneg %p81
        $region14: #{tpu_custom_call.1} parent=11 // pred_check_branch
          %252 = sbr.rel (%p250) target = $region16
        $region15: #{tpu_custom_call.1} parent=11 // pred_region
          _
        $region16: #{tpu_custom_call.1} parent=11 // pred_fallthru
          _
        // Predicated region
        $region17: #{tpu_custom_call.1} parent=11 // pred_check
          %p253 = pneg %p102
        $region18: #{tpu_custom_call.1} parent=11 // pred_check_branch
          %255 = sbr.rel (%p253) target = $region20
        $region19: #{tpu_custom_call.1} parent=11 // pred_region
          _
        $region20: #{tpu_custom_call.1} parent=11 // pred_fallthru
          _
        // Predicated region
        $region21: #{tpu_custom_call.1} parent=11 // pred_check
          %p256 = pneg %p123
        $region22: #{tpu_custom_call.1} parent=11 // pred_check_branch
          %258 = sbr.rel (%p256) target = $region24
        $region23: #{tpu_custom_call.1} parent=11 // pred_region
          %s260 = ssub.s32 2048, 2048
          %261 = vsyncadd [#allocation7], %s260
          %s262 = sshll.u32 [#allocation6], 4
          %s263 = int_to_ptr.vmem [resolvable:$true] %s262
          %268 = dma.hbm_to_vmem [thread:$0]  %s3, 2048, %s263, [#allocation7], 128, 128, 8
        $region24: #{tpu_custom_call.1} parent=11 // pred_fallthru
          _
        // Predicated region
        $region25: #{tpu_custom_call.1} parent=11 // pred_check
          %p269 = pneg %p144
        $region26: #{tpu_custom_call.1} parent=11 // pred_check_branch
          %271 = sbr.rel (%p269) target = $region28
        $region27: #{tpu_custom_call.1} parent=11 // pred_region
          %s273 = ssub.s32 3072, 3072
          %274 = vsyncadd [#allocation7], %s273
          %s275 = sshll.u32 [#allocation8], 4
          %s276 = int_to_ptr.vmem [resolvable:$true] %s275
          %281 = dma.hbm_to_vmem [thread:$0]  %s4, 3072, %s276, [#allocation7], 192, 192, 12
        $region28: #{tpu_custom_call.1} parent=11 // pred_fallthru
          _
        // Predicated region
        $region29: #{tpu_custom_call.1} parent=11 // pred_check
          %p282 = pneg %p165
        $region30: #{tpu_custom_call.1} parent=11 // pred_check_branch
          %284 = sbr.rel (%p282) target = $region32
        $region31: #{tpu_custom_call.1} parent=11 // pred_region
          _
        $region32: #{tpu_custom_call.1} parent=11 // pred_fallthru
          _
        // Predicated region
        $region33: #{tpu_custom_call.1} parent=11 // pred_check
          %p285 = pneg %p186
        $region34: #{tpu_custom_call.1} parent=11 // pred_check_branch
          %287 = sbr.rel (%p285) target = $region36
        $region35: #{tpu_custom_call.1} parent=11 // pred_region
          %s289 = ssub.s32 1024, 1024
          %290 = vsyncadd [#allocation10], %s289
          %s291 = sshll.u32 [#allocation9], 4
          %s292 = int_to_ptr.vmem [resolvable:$true] %s291
          %297 = dma.hbm_to_vmem [thread:$0]  %s6, 1024, %s292, [#allocation10], 64, 64, 4
        $region36: #{tpu_custom_call.1} parent=11 // pred_fallthru
          _
        // Predicated region
        $region37: #{tpu_custom_call.1} parent=11 // pred_check
          %p298 = pneg %p207
        $region38: #{tpu_custom_call.1} parent=11 // pred_check_branch
          %300 = sbr.rel (%p298) target = $region40
        $region39: #{tpu_custom_call.1} parent=11 // pred_region
          _
        $region40: #{tpu_custom_call.1} parent=11 // pred_fallthru
          _
      $region12: #{tpu_custom_call.1} parent=5 // pred_fallthru
        _
      %p301 = scmp.lt.s32.totalorder %s22, 4
      // Predicated region
      $region41: #{tpu_custom_call.1} parent=5 // pred_check
        %p302 = pneg %p301
      $region42: #{tpu_custom_call.1} parent=5 // pred_check_branch
        %304 = sbr.rel (%p302) target = $region44
      $region43: #{tpu_custom_call.1} parent=5 // pred_region
        // Predicated region
        $region45: #{tpu_custom_call.1} parent=43 // pred_check
          %p305 = pneg %p54
        $region46: #{tpu_custom_call.1} parent=43 // pred_check_branch
          %307 = sbr.rel (%p305) target = $region48
        $region47: #{tpu_custom_call.1} parent=43 // pred_region
          %s308 = sand.u32 %s44, 1
          %s309 = scalar_lea.sflag [#allocation4], %s308
          %s310 = sand.u32 %s44, 1
          %s311 = smul.addr %s310, 256
          %s312 = scalar_lea.vmem [#allocation3], %s311
          %s314 = ssub.s32 4096, 4096
          %315 = vsyncadd %s309, %s314
          %s316 = smul.addr %s29, 32
          %s317 = smul.addr %s316, 128
          %s318 = scalar_lea.hbm %s0, %s317
          %s319 = sshll.u32 %s312, 4
          %s320 = int_to_ptr.vmem [resolvable:$true] %s319
          %325 = dma.hbm_to_vmem [thread:$0]  %s318, 4096, %s320, %s309, 128, 128, 8
        $region48: #{tpu_custom_call.1} parent=43 // pred_fallthru
          _
      $region44: #{tpu_custom_call.1} parent=5 // pred_fallthru
        _
      %p326 = scmp.le.s32.totalorder 1, %s22
      %p327 = scmp.lt.s32.totalorder %s22, 5
      %p328 = pnand %p326, %p327
      %p329 = pneg %p328
      // Predicated region
      $region49: #{tpu_custom_call.1} parent=5 // pred_check
        _
      $region50: #{tpu_custom_call.1} parent=5 // pred_check_branch
        %331 = sbr.rel (%p328) target = $region52
      $region51: #{tpu_custom_call.1} parent=5 // pred_region
        %s332 = ssub.s32 %s22, 1
        %s333 = sand.u32 %s47, 1
        %s334 = scalar_lea.sflag [#allocation4], %s333
        %s335 = sand.u32 %s47, 1
        %s336 = smul.addr %s335, 256
        %s337 = scalar_lea.vmem [#allocation3], %s336
        // Predicated region
        $region53: #{tpu_custom_call.1} parent=51 // pred_check
          %p338 = pneg %p60
        $region54: #{tpu_custom_call.1} parent=51 // pred_check_branch
          %340 = sbr.rel (%p338) target = $region56
        $region55: #{tpu_custom_call.1} parent=51 // pred_region
          %341 = dma.done %s334, 4096
        $region56: #{tpu_custom_call.1} parent=51 // pred_fallthru
          _
        // Predicated region
        $region57: #{tpu_custom_call.1} parent=51 // pred_check
          %p342 = pneg %p123
        $region58: #{tpu_custom_call.1} parent=51 // pred_check_branch
          %344 = sbr.rel (%p342) target = $region60
        $region59: #{tpu_custom_call.1} parent=51 // pred_region
          %345 = dma.done [#allocation7], 2048
        $region60: #{tpu_custom_call.1} parent=51 // pred_fallthru
          _
        // Predicated region
        $region61: #{tpu_custom_call.1} parent=51 // pred_check
          %p346 = pneg %p144
        $region62: #{tpu_custom_call.1} parent=51 // pred_check_branch
          %348 = sbr.rel (%p346) target = $region64
        $region63: #{tpu_custom_call.1} parent=51 // pred_region
          %349 = dma.done [#allocation7], 3072
        $region64: #{tpu_custom_call.1} parent=51 // pred_fallthru
          _
        // Predicated region
        $region65: #{tpu_custom_call.1} parent=51 // pred_check
          %p350 = pneg %p186
        $region66: #{tpu_custom_call.1} parent=51 // pred_check_branch
          %352 = sbr.rel (%p350) target = $region68
        $region67: #{tpu_custom_call.1} parent=51 // pred_region
          %353 = dma.done [#allocation10], 1024
        $region68: #{tpu_custom_call.1} parent=51 // pred_fallthru
          _
        %s354 = sand.u32 %s47, 1
        %s355 = scalar_lea.sflag [#allocation4], %s354
        %s356 = sand.u32 %s47, 1
        %s357 = smul.addr %s356, 256
        %s358 = scalar_lea.vmem [#allocation3], %s357
        %p359 = pneg %p60
        %p360 = pneg %p57
        %p361 = pneg %p81
        %p362 = pneg %p78
        %p363 = pneg %p102
        %p364 = pneg %p99
        %p365 = pneg %p123
        %p366 = pneg %p120
        %p367 = pneg %p144
        %p368 = pneg %p141
        %p369 = pneg %p165
        %p370 = pneg %p162
        %p371 = pneg %p186
        %p372 = pneg %p183
        %p373 = pneg %p207
        %p374 = pneg %p204
        %p375 = pneg %p235
        %p376 = pneg %p232
        %s377 = sand.u32 %s222, 1
        %s378 = scalar_lea.sflag [#allocation5], %s377
        %s379 = sand.u32 %s222, 1
        %s380 = smul.addr %s379, 128
        %s381 = scalar_lea.vmem [#allocation11], %s380
        %s382 = smul.u32 16, %s32
        %p384 = scmp.eq.s32.totalorder %s32, 0
        // Predicated region
        $region69: #{tpu_custom_call.1} parent=51 // pred_check
          %p385 = pneg %p384
        $region70: #{tpu_custom_call.1} parent=51 // pred_check_branch
          %387 = sbr.rel (%p385) target = $region72
        $region71: #{tpu_custom_call.1} parent=51 // pred_region
          %v388 = vld [vmem:[%s337] sm:$0xff]
          %v389 = vld [vmem:[%s337 + $0x8] sm:$0xff]
          %v390 = vld [vmem:[%s337 + $0x10] sm:$0xff]
          %v391 = vld [vmem:[%s337 + $0x18] sm:$0xff]
          %v392 = vld [vmem:[%s337 + $0x20] sm:$0xff]
          %v393 = vld [vmem:[%s337 + $0x28] sm:$0xff]
          %v394 = vld [vmem:[%s337 + $0x30] sm:$0xff]
          %v395 = vld [vmem:[%s337 + $0x38] sm:$0xff]
          %v396 = vld [vmem:[%s337 + $0x40] sm:$0xff]
          %v397 = vld [vmem:[%s337 + $0x48] sm:$0xff]
          %v398 = vld [vmem:[%s337 + $0x50] sm:$0xff]
          %v399 = vld [vmem:[%s337 + $0x58] sm:$0xff]
          %v400 = vld [vmem:[%s337 + $0x60] sm:$0xff]
          %v401 = vld [vmem:[%s337 + $0x68] sm:$0xff]
          %v402 = vld [vmem:[%s337 + $0x70] sm:$0xff]
          %v403 = vld [vmem:[%s337 + $0x78] sm:$0xff]
          %v404 = vld [vmem:[%s337 + $0x80] sm:$0xff]
          %v405 = vld [vmem:[%s337 + $0x88] sm:$0xff]
          %v406 = vld [vmem:[%s337 + $0x90] sm:$0xff]
          %v407 = vld [vmem:[%s337 + $0x98] sm:$0xff]
          %v408 = vld [vmem:[%s337 + $0xa0] sm:$0xff]
          %v409 = vld [vmem:[%s337 + $0xa8] sm:$0xff]
          %v410 = vld [vmem:[%s337 + $0xb0] sm:$0xff]
          %v411 = vld [vmem:[%s337 + $0xb8] sm:$0xff]
          %v412 = vld [vmem:[%s337 + $0xc0] sm:$0xff]
          %v413 = vld [vmem:[%s337 + $0xc8] sm:$0xff]
          %v414 = vld [vmem:[%s337 + $0xd0] sm:$0xff]
          %v415 = vld [vmem:[%s337 + $0xd8] sm:$0xff]
          %v416 = vld [vmem:[%s337 + $0xe0] sm:$0xff]
          %v417 = vld [vmem:[%s337 + $0xe8] sm:$0xff]
          %v418 = vld [vmem:[%s337 + $0xf0] sm:$0xff]
          %v419 = vld [vmem:[%s337 + $0xf8] sm:$0xff]
          %v420 = vadd.f32 %v388, %v389
          %v421 = vadd.f32 %v420, %v390
          %v422 = vadd.f32 %v421, %v391
          %v423 = vadd.f32 %v422, %v392
          %v424 = vadd.f32 %v423, %v393
          %v425 = vadd.f32 %v424, %v394
          %v426 = vadd.f32 %v425, %v395
          %v427 = vadd.f32 %v426, %v396
          %v428 = vadd.f32 %v427, %v397
          %v429 = vadd.f32 %v428, %v398
          %v430 = vadd.f32 %v429, %v399
          %v431 = vadd.f32 %v430, %v400
          %v432 = vadd.f32 %v431, %v401
          %v433 = vadd.f32 %v432, %v402
          %v434 = vadd.f32 %v433, %v403
          %v435 = vadd.f32 %v434, %v404
          %v436 = vadd.f32 %v435, %v405
          %v437 = vadd.f32 %v436, %v406
          %v438 = vadd.f32 %v437, %v407
          %v439 = vadd.f32 %v438, %v408
          %v440 = vadd.f32 %v439, %v409
          %v441 = vadd.f32 %v440, %v410
          %v442 = vadd.f32 %v441, %v411
          %v443 = vadd.f32 %v442, %v412
          %v444 = vadd.f32 %v443, %v413
          %v445 = vadd.f32 %v444, %v414
          %v446 = vadd.f32 %v445, %v415
          %v447 = vadd.f32 %v446, %v416
          %v448 = vadd.f32 %v447, %v417
          %v449 = vadd.f32 %v448, %v418
          %v450 = vadd.f32 %v449, %v419
          %v451 = vrot.slane %v450, 4
          %v452 = vadd.f32 %v450, %v451
          %v453 = vrot.slane %v452, 2
          %v454 = vadd.f32 %v452, %v453
          %v455 = vrot.slane %v454, 1
          %v456 = vadd.f32 %v454, %v455
          %v457 = vld [vmem:[#allocation6] sm:$0xff]
          %v458 = vld [vmem:[#allocation6 + $0x8] sm:$0xff]
          %v459 = vld [vmem:[#allocation6 + $0x10] sm:$0xff]
          %v460 = vld [vmem:[#allocation6 + $0x18] sm:$0xff]
          %v461 = vld [vmem:[#allocation6 + $0x20] sm:$0xff]
          %v462 = vld [vmem:[#allocation6 + $0x28] sm:$0xff]
          %v463 = vld [vmem:[#allocation6 + $0x30] sm:$0xff]
          %v464 = vld [vmem:[#allocation6 + $0x38] sm:$0xff]
          %v465 = vld [vmem:[#allocation6 + $0x40] sm:$0xff]
          %v466 = vld [vmem:[#allocation6 + $0x48] sm:$0xff]
          %v467 = vld [vmem:[#allocation6 + $0x50] sm:$0xff]
          %v468 = vld [vmem:[#allocation6 + $0x58] sm:$0xff]
          %v469 = vld [vmem:[#allocation6 + $0x60] sm:$0xff]
          %v470 = vld [vmem:[#allocation6 + $0x68] sm:$0xff]
          %v471 = vld [vmem:[#allocation6 + $0x70] sm:$0xff]
          %v472 = vld [vmem:[#allocation6 + $0x78] sm:$0xff]
          %473 = vmatprep.subr.mxu0 0.0
          %474 = vmatpush1.msra.mxu0 %v457
          %475 = vmatprep.subr.mxu0 0.0
          %476 = vmatpush1.msra.mxu0 %v458
          %477 = vmatprep.subr.mxu0 0.0
          %478 = vmatpush1.msra.mxu0 %v459
          %479 = vmatprep.subr.mxu0 0.0
          %480 = vmatpush1.msra.mxu0 %v460
          %481 = vmatprep.subr.mxu0 0.0
          %482 = vmatpush1.msra.mxu0 %v461
          %483 = vmatprep.subr.mxu0 0.0
          %484 = vmatpush1.msra.mxu0 %v462
          %485 = vmatprep.subr.mxu0 0.0
          %486 = vmatpush1.msra.mxu0 %v463
          %487 = vmatprep.subr.mxu0 0.0
          %488 = vmatpush1.msra.mxu0 %v464
          %489 = vmatprep.subr.mxu0 0.0
          %490 = vmatpush1.msra.mxu0 %v465
          %491 = vmatprep.subr.mxu0 0.0
          %492 = vmatpush1.msra.mxu0 %v466
          %493 = vmatprep.subr.mxu0 0.0
          %494 = vmatpush1.msra.mxu0 %v467
          %495 = vmatprep.subr.mxu0 0.0
          %496 = vmatpush1.msra.mxu0 %v468
          %497 = vmatprep.subr.mxu0 0.0
          %498 = vmatpush1.msra.mxu0 %v469
          %499 = vmatprep.subr.mxu0 0.0
          %500 = vmatpush1.msra.mxu0 %v470
          %501 = vmatprep.subr.mxu0 0.0
          %502 = vmatpush1.msra.mxu0 %v471
          %503 = vmatprep.subr.mxu0 0.0
          %504 = vmatpush1.msra.mxu0 %v472
          %505 = vmatprep.subr.mxu0 0.0
          %506 = vmatpush1.msra.mxu0 0.0
          %507 = vmatprep.subr.mxu0 0.0
          %508 = vmatpush1.msra.mxu0 0.0
          %509 = vmatprep.subr.mxu0 0.0
          %510 = vmatpush1.msra.mxu0 0.0
          %511 = vmatprep.subr.mxu0 0.0
          %512 = vmatpush1.msra.mxu0 0.0
          %513 = vmatprep.subr.mxu0 0.0
          %514 = vmatpush1.msra.mxu0 0.0
          %515 = vmatprep.subr.mxu0 0.0
          %516 = vmatpush1.msra.mxu0 0.0
          %517 = vmatprep.subr.mxu0 0.0
          %518 = vmatpush1.msra.mxu0 0.0
          %519 = vmatprep.subr.mxu0 0.0
          %520 = vmatpush1.msra.mxu0 0.0
          %521 = vmatprep.subr.mxu0 0.0
          %522 = vmatpush1.msra.mxu0 0.0
          %523 = vmatprep.subr.mxu0 0.0
          %524 = vmatpush1.msra.mxu0 0.0
          %525 = vmatprep.subr.mxu0 0.0
          %526 = vmatpush1.msra.mxu0 0.0
          %527 = vmatprep.subr.mxu0 0.0
          %528 = vmatpush1.msra.mxu0 0.0
          %529 = vmatprep.subr.mxu0 0.0
          %530 = vmatpush1.msra.mxu0 0.0
          %531 = vmatprep.subr.mxu0 0.0
          %532 = vmatpush1.msra.mxu0 0.0
          %533 = vmatprep.subr.mxu0 0.0
          %534 = vmatpush1.msra.mxu0 0.0
          %535 = vmatprep.subr.mxu0 0.0
          %536 = vmatpush1.msra.mxu0 0.0
          %537 = vmatprep.mubr.f32.mxu0 0.0
          %538 = vmatmul.mubr.f32.gmra.mrb[0].mxu0 %v456
          %v539 = vpop.f32.mrb[0].mxu0
          %v540 = vadd.f32 0.0, %v539
          %v541 = vpop.f32.mrb[0].mxu0
          %542 = vdwg.mxu0
          %v543 = vlaneseq
          %v544 = vshrl.u32 %v543, 7
          %v545 = vsub.s32 0, %v544
          %v546 = vrot.slane %v540, %v545
          %v547 = vsub.f32 %v388, %v546
          %v548 = vsub.f32 %v389, %v546
          %v549 = vsub.f32 %v390, %v546
          %v550 = vsub.f32 %v391, %v546
          %v551 = vsub.f32 %v392, %v546
          %v552 = vsub.f32 %v393, %v546
          %v553 = vsub.f32 %v394, %v546
          %v554 = vsub.f32 %v395, %v546
          %v555 = vsub.f32 %v396, %v546
          %v556 = vsub.f32 %v397, %v546
          %v557 = vsub.f32 %v398, %v546
          %v558 = vsub.f32 %v399, %v546
          %v559 = vsub.f32 %v400, %v546
          %v560 = vsub.f32 %v401, %v546
          %v561 = vsub.f32 %v402, %v546
          %v562 = vsub.f32 %v403, %v546
          %v563 = vsub.f32 %v404, %v546
          %v564 = vsub.f32 %v405, %v546
          %v565 = vsub.f32 %v406, %v546
          %v566 = vsub.f32 %v407, %v546
          %v567 = vsub.f32 %v408, %v546
          %v568 = vsub.f32 %v409, %v546
          %v569 = vsub.f32 %v410, %v546
          %v570 = vsub.f32 %v411, %v546
          %v571 = vsub.f32 %v412, %v546
          %v572 = vsub.f32 %v413, %v546
          %v573 = vsub.f32 %v414, %v546
          %v574 = vsub.f32 %v415, %v546
          %v575 = vsub.f32 %v416, %v546
          %v576 = vsub.f32 %v417, %v546
          %v577 = vsub.f32 %v418, %v546
          %v578 = vsub.f32 %v419, %v546
          %v579 = vmul.f32 %v547, %v547
          %v580 = vmul.f32 %v548, %v548
          %v581 = vmul.f32 %v549, %v549
          %v582 = vmul.f32 %v550, %v550
          %v583 = vmul.f32 %v551, %v551
          %v584 = vmul.f32 %v552, %v552
          %v585 = vmul.f32 %v553, %v553
          %v586 = vmul.f32 %v554, %v554
          %v587 = vmul.f32 %v555, %v555
          %v588 = vmul.f32 %v556, %v556
          %v589 = vmul.f32 %v557, %v557
          %v590 = vmul.f32 %v558, %v558
          %v591 = vmul.f32 %v559, %v559
          %v592 = vmul.f32 %v560, %v560
          %v593 = vmul.f32 %v561, %v561
          %v594 = vmul.f32 %v562, %v562
          %v595 = vmul.f32 %v563, %v563
          %v596 = vmul.f32 %v564, %v564
          %v597 = vmul.f32 %v565, %v565
          %v598 = vmul.f32 %v566, %v566
          %v599 = vmul.f32 %v567, %v567
          %v600 = vmul.f32 %v568, %v568
          %v601 = vmul.f32 %v569, %v569
          %v602 = vmul.f32 %v570, %v570
          %v603 = vmul.f32 %v571, %v571
          %v604 = vmul.f32 %v572, %v572
          %v605 = vmul.f32 %v573, %v573
          %v606 = vmul.f32 %v574, %v574
          %v607 = vmul.f32 %v575, %v575
          %v608 = vmul.f32 %v576, %v576
          %v609 = vmul.f32 %v577, %v577
          %v610 = vmul.f32 %v578, %v578
          %v611 = vadd.f32 %v579, %v580
          %v612 = vadd.f32 %v611, %v581
          %v613 = vadd.f32 %v612, %v582
          %v614 = vadd.f32 %v613, %v583
          %v615 = vadd.f32 %v614, %v584
          %v616 = vadd.f32 %v615, %v585
          %v617 = vadd.f32 %v616, %v586
          %v618 = vadd.f32 %v617, %v587
          %v619 = vadd.f32 %v618, %v588
          %v620 = vadd.f32 %v619, %v589
          %v621 = vadd.f32 %v620, %v590
          %v622 = vadd.f32 %v621, %v591
          %v623 = vadd.f32 %v622, %v592
          %v624 = vadd.f32 %v623, %v593
          %v625 = vadd.f32 %v624, %v594
          %v626 = vadd.f32 %v625, %v595
          %v627 = vadd.f32 %v626, %v596
          %v628 = vadd.f32 %v627, %v597
          %v629 = vadd.f32 %v628, %v598
          %v630 = vadd.f32 %v629, %v599
          %v631 = vadd.f32 %v630, %v600
          %v632 = vadd.f32 %v631, %v601
          %v633 = vadd.f32 %v632, %v602
          %v634 = vadd.f32 %v633, %v603
          %v635 = vadd.f32 %v634, %v604
          %v636 = vadd.f32 %v635, %v605
          %v637 = vadd.f32 %v636, %v606
          %v638 = vadd.f32 %v637, %v607
          %v639 = vadd.f32 %v638, %v608
          %v640 = vadd.f32 %v639, %v609
          %v641 = vadd.f32 %v640, %v610
          %v642 = vrot.slane %v641, 4
          %v643 = vadd.f32 %v641, %v642
          %v644 = vrot.slane %v643, 2
          %v645 = vadd.f32 %v643, %v644
          %v646 = vrot.slane %v645, 1
          %v647 = vadd.f32 %v645, %v646
          %648 = vmatprep.subr.mxu0 0.0
          %649 = vmatpush1.msra.mxu0 %v457
          %650 = vmatprep.subr.mxu0 0.0
          %651 = vmatpush1.msra.mxu0 %v458
          %652 = vmatprep.subr.mxu0 0.0
          %653 = vmatpush1.msra.mxu0 %v459
          %654 = vmatprep.subr.mxu0 0.0
          %655 = vmatpush1.msra.mxu0 %v460
          %656 = vmatprep.subr.mxu0 0.0
          %657 = vmatpush1.msra.mxu0 %v461
          %658 = vmatprep.subr.mxu0 0.0
          %659 = vmatpush1.msra.mxu0 %v462
          %660 = vmatprep.subr.mxu0 0.0
          %661 = vmatpush1.msra.mxu0 %v463
          %662 = vmatprep.subr.mxu0 0.0
          %663 = vmatpush1.msra.mxu0 %v464
          %664 = vmatprep.subr.mxu0 0.0
          %665 = vmatpush1.msra.mxu0 %v465
          %666 = vmatprep.subr.mxu0 0.0
          %667 = vmatpush1.msra.mxu0 %v466
          %668 = vmatprep.subr.mxu0 0.0
          %669 = vmatpush1.msra.mxu0 %v467
          %670 = vmatprep.subr.mxu0 0.0
          %671 = vmatpush1.msra.mxu0 %v468
          %672 = vmatprep.subr.mxu0 0.0
          %673 = vmatpush1.msra.mxu0 %v469
          %674 = vmatprep.subr.mxu0 0.0
          %675 = vmatpush1.msra.mxu0 %v470
          %676 = vmatprep.subr.mxu0 0.0
          %677 = vmatpush1.msra.mxu0 %v471
          %678 = vmatprep.subr.mxu0 0.0
          %679 = vmatpush1.msra.mxu0 %v472
          %680 = vmatprep.subr.mxu0 0.0
          %681 = vmatpush1.msra.mxu0 0.0
          %682 = vmatprep.subr.mxu0 0.0
          %683 = vmatpush1.msra.mxu0 0.0
          %684 = vmatprep.subr.mxu0 0.0
          %685 = vmatpush1.msra.mxu0 0.0
          %686 = vmatprep.subr.mxu0 0.0
          %687 = vmatpush1.msra.mxu0 0.0
          %688 = vmatprep.subr.mxu0 0.0
          %689 = vmatpush1.msra.mxu0 0.0
          %690 = vmatprep.subr.mxu0 0.0
          %691 = vmatpush1.msra.mxu0 0.0
          %692 = vmatprep.subr.mxu0 0.0
          %693 = vmatpush1.msra.mxu0 0.0
          %694 = vmatprep.subr.mxu0 0.0
          %695 = vmatpush1.msra.mxu0 0.0
          %696 = vmatprep.subr.mxu0 0.0
          %697 = vmatpush1.msra.mxu0 0.0
          %698 = vmatprep.subr.mxu0 0.0
          %699 = vmatpush1.msra.mxu0 0.0
          %700 = vmatprep.subr.mxu0 0.0
          %701 = vmatpush1.msra.mxu0 0.0
          %702 = vmatprep.subr.mxu0 0.0
          %703 = vmatpush1.msra.mxu0 0.0
          %704 = vmatprep.subr.mxu0 0.0
          %705 = vmatpush1.msra.mxu0 0.0
          %706 = vmatprep.subr.mxu0 0.0
          %707 = vmatpush1.msra.mxu0 0.0
          %708 = vmatprep.subr.mxu0 0.0
          %709 = vmatpush1.msra.mxu0 0.0
          %710 = vmatprep.subr.mxu0 0.0
          %711 = vmatpush1.msra.mxu0 0.0
          %712 = vmatprep.mubr.f32.mxu0 0.0
          %713 = vmatmul.mubr.f32.gmra.mrb[0].mxu0 %v647
          %v714 = vpop.f32.mrb[0].mxu0
          %v715 = vadd.f32 1e-06, %v714
          %v716 = vpop.f32.mrb[0].mxu0
          %717 = vdwg.mxu0
          %v718 = vrsqrt.pop %v715
          %v719 = vld [vmem:[%s1] sm:$0x1]
          %v720 = vmul.f32 %v718, %v719
          %v721 = vlaneseq
          %v722 = vshrl.u32 %v721, 7
          %v723 = vsub.s32 0, %v722
          %v724 = vrot.slane %v720, %v723
          %v725 = vmul.f32 %v547, %v724
          %v726 = vmul.f32 %v548, %v724
          %v727 = vmul.f32 %v549, %v724
          %v728 = vmul.f32 %v550, %v724
          %v729 = vmul.f32 %v551, %v724
          %v730 = vmul.f32 %v552, %v724
          %v731 = vmul.f32 %v553, %v724
          %v732 = vmul.f32 %v554, %v724
          %v733 = vmul.f32 %v555, %v724
          %v734 = vmul.f32 %v556, %v724
          %v735 = vmul.f32 %v557, %v724
          %v736 = vmul.f32 %v558, %v724
          %v737 = vmul.f32 %v559, %v724
          %v738 = vmul.f32 %v560, %v724
          %v739 = vmul.f32 %v561, %v724
          %v740 = vmul.f32 %v562, %v724
          %v741 = vmul.f32 %v563, %v724
          %v742 = vmul.f32 %v564, %v724
          %v743 = vmul.f32 %v565, %v724
          %v744 = vmul.f32 %v566, %v724
          %v745 = vmul.f32 %v567, %v724
          %v746 = vmul.f32 %v568, %v724
          %v747 = vmul.f32 %v569, %v724
          %v748 = vmul.f32 %v570, %v724
          %v749 = vmul.f32 %v571, %v724
          %v750 = vmul.f32 %v572, %v724
          %v751 = vmul.f32 %v573, %v724
          %v752 = vmul.f32 %v574, %v724
          %v753 = vmul.f32 %v575, %v724
          %v754 = vmul.f32 %v576, %v724
          %v755 = vmul.f32 %v577, %v724
          %v756 = vmul.f32 %v578, %v724
          %v757 = vld [vmem:[%s2] sm:$0x1]
          %v759 = vlaneseq
          %v760 = vshrl.u32 %v759, 7
          %v761 = vsub.s32 0, %v760
          %v762 = vrot.slane %v757, %v761
          %v764 = vadd.f32 %v725, %v762
          %v765 = vadd.f32 %v726, %v762
          %v766 = vadd.f32 %v727, %v762
          %v767 = vadd.f32 %v728, %v762
          %v768 = vadd.f32 %v729, %v762
          %v769 = vadd.f32 %v730, %v762
          %v770 = vadd.f32 %v731, %v762
          %v771 = vadd.f32 %v732, %v762
          %v772 = vadd.f32 %v733, %v762
          %v773 = vadd.f32 %v734, %v762
          %v774 = vadd.f32 %v735, %v762
          %v775 = vadd.f32 %v736, %v762
          %v776 = vadd.f32 %v737, %v762
          %v777 = vadd.f32 %v738, %v762
          %v778 = vadd.f32 %v739, %v762
          %v779 = vadd.f32 %v740, %v762
          %v780 = vadd.f32 %v741, %v762
          %v781 = vadd.f32 %v742, %v762
          %v782 = vadd.f32 %v743, %v762
          %v783 = vadd.f32 %v744, %v762
          %v784 = vadd.f32 %v745, %v762
          %v785 = vadd.f32 %v746, %v762
          %v786 = vadd.f32 %v747, %v762
          %v787 = vadd.f32 %v748, %v762
          %v788 = vadd.f32 %v749, %v762
          %v789 = vadd.f32 %v750, %v762
          %v790 = vadd.f32 %v751, %v762
          %v791 = vadd.f32 %v752, %v762
          %v792 = vadd.f32 %v753, %v762
          %v793 = vadd.f32 %v754, %v762
          %v794 = vadd.f32 %v755, %v762
          %v795 = vadd.f32 %v756, %v762
          %v796 = vpack.c.bf16 %v765, %v764
          %v797 = vpack.c.bf16 %v767, %v766
          %v798 = vpack.c.bf16 %v769, %v768
          %v799 = vpack.c.bf16 %v771, %v770
          %v800 = vpack.c.bf16 %v773, %v772
          %v801 = vpack.c.bf16 %v775, %v774
          %v802 = vpack.c.bf16 %v777, %v776
          %v803 = vpack.c.bf16 %v779, %v778
          %v804 = vpack.c.bf16 %v781, %v780
          %v805 = vpack.c.bf16 %v783, %v782
          %v806 = vpack.c.bf16 %v785, %v784
          %v807 = vpack.c.bf16 %v787, %v786
          %v808 = vpack.c.bf16 %v789, %v788
          %v809 = vpack.c.bf16 %v791, %v790
          %v810 = vpack.c.bf16 %v793, %v792
          %v811 = vpack.c.bf16 %v795, %v794
          %v812 = vld [vmem:[#allocation8] sm:$0xff]
          %v813 = vld [vmem:[#allocation8 + $0x8] sm:$0xf]
          %v814 = vld [vmem:[#allocation8 + $0xc] sm:$0xff]
          %v815 = vld [vmem:[#allocation8 + $0x14] sm:$0xf]
          %v816 = vld [vmem:[#allocation8 + $0x18] sm:$0xff]
          %v817 = vld [vmem:[#allocation8 + $0x20] sm:$0xf]
          %v818 = vld [vmem:[#allocation8 + $0x24] sm:$0xff]
          %v819 = vld [vmem:[#allocation8 + $0x2c] sm:$0xf]
          %v820 = vld [vmem:[#allocation8 + $0x30] sm:$0xff]
          %v821 = vld [vmem:[#allocation8 + $0x38] sm:$0xf]
          %v822 = vld [vmem:[#allocation8 + $0x3c] sm:$0xff]
          %v823 = vld [vmem:[#allocation8 + $0x44] sm:$0xf]
          %v824 = vld [vmem:[#allocation8 + $0x48] sm:$0xff]
          %v825 = vld [vmem:[#allocation8 + $0x50] sm:$0xf]
          %v826 = vld [vmem:[#allocation8 + $0x54] sm:$0xff]
          %v827 = vld [vmem:[#allocation8 + $0x5c] sm:$0xf]
          %v828 = vld [vmem:[#allocation8 + $0x60] sm:$0xff]
          %v829 = vld [vmem:[#allocation8 + $0x68] sm:$0xf]
          %v830 = vld [vmem:[#allocation8 + $0x6c] sm:$0xff]
          %v831 = vld [vmem:[#allocation8 + $0x74] sm:$0xf]
          %v832 = vld [vmem:[#allocation8 + $0x78] sm:$0xff]
          %v833 = vld [vmem:[#allocation8 + $0x80] sm:$0xf]
          %v834 = vld [vmem:[#allocation8 + $0x84] sm:$0xff]
          %v835 = vld [vmem:[#allocation8 + $0x8c] sm:$0xf]
          %v836 = vld [vmem:[#allocation8 + $0x90] sm:$0xff]
          %v837 = vld [vmem:[#allocation8 + $0x98] sm:$0xf]
          %v838 = vld [vmem:[#allocation8 + $0x9c] sm:$0xff]
          %v839 = vld [vmem:[#allocation8 + $0xa4] sm:$0xf]
          %v840 = vld [vmem:[#allocation8 + $0xa8] sm:$0xff]
          %v841 = vld [vmem:[#allocation8 + $0xb0] sm:$0xf]
          %v842 = vld [vmem:[#allocation8 + $0xb4] sm:$0xff]
          %v843 = vld [vmem:[#allocation8 + $0xbc] sm:$0xf]
          %v844 = vld [vmem:[%s5] sm:$0x7]
          %v846 = vlaneseq
          %v847 = vshrl.u32 %v846, 7
          %v848 = vsub.s32 0, %v847
          %v849 = vrot.slane %v844, %v848
          %v850 = vlaneseq
          %v851 = vshrl.u32 %v850, 7
          %v852 = vsub.s32 1, %v851
          %v853 = vrot.slane %v844, %v852
          %v854 = vlaneseq
          %v855 = vshrl.u32 %v854, 7
          %v856 = vsub.s32 2, %v855
          %v857 = vrot.slane %v844, %v856
          %v893 = vunpack.c.l.b16 %v812
          %v894 = vunpack.c.h.b16 %v812
          %v895 = vunpack.c.l.b16 %v813
          %v896 = vunpack.c.l.b16 %v814
          %v897 = vunpack.c.h.b16 %v814
          %v898 = vunpack.c.l.b16 %v815
          %v899 = vunpack.c.l.b16 %v816
          %v900 = vunpack.c.h.b16 %v816
          %v901 = vunpack.c.l.b16 %v817
          %v902 = vunpack.c.l.b16 %v818
          %v903 = vunpack.c.h.b16 %v818
          %v904 = vunpack.c.l.b16 %v819
          %v905 = vunpack.c.l.b16 %v820
          %v906 = vunpack.c.h.b16 %v820
          %v907 = vunpack.c.l.b16 %v821
          %v908 = vunpack.c.l.b16 %v822
          %v909 = vunpack.c.h.b16 %v822
          %v910 = vunpack.c.l.b16 %v823
          %v911 = vunpack.c.l.b16 %v824
          %v912 = vunpack.c.h.b16 %v824
          %v913 = vunpack.c.l.b16 %v825
          %v914 = vunpack.c.l.b16 %v826
          %v915 = vunpack.c.h.b16 %v826
          %v916 = vunpack.c.l.b16 %v827
          %v917 = vunpack.c.l.b16 %v828
          %v918 = vunpack.c.h.b16 %v828
          %v919 = vunpack.c.l.b16 %v829
          %v920 = vunpack.c.l.b16 %v830
          %v921 = vunpack.c.h.b16 %v830
          %v922 = vunpack.c.l.b16 %v831
          %v923 = vunpack.c.l.b16 %v832
          %v924 = vunpack.c.h.b16 %v832
          %v925 = vunpack.c.l.b16 %v833
          %v926 = vunpack.c.l.b16 %v834
          %v927 = vunpack.c.h.b16 %v834
          %v928 = vunpack.c.l.b16 %v835
          %v929 = vunpack.c.l.b16 %v836
          %v930 = vunpack.c.h.b16 %v836
          %v931 = vunpack.c.l.b16 %v837
          %v932 = vunpack.c.l.b16 %v838
          %v933 = vunpack.c.h.b16 %v838
          %v934 = vunpack.c.l.b16 %v839
          %v935 = vunpack.c.l.b16 %v840
          %v936 = vunpack.c.h.b16 %v840
          %v937 = vunpack.c.l.b16 %v841
          %v938 = vunpack.c.l.b16 %v842
          %v939 = vunpack.c.h.b16 %v842
          %v940 = vunpack.c.l.b16 %v843
          %v941 = vpack.c.b16 %v896, %v893
          %v942 = vpack.c.b16 %v897, %v894
          %v943 = vpack.c.b16 %v898, %v895
          %v944 = vpack.c.b16 %v902, %v899
          %v945 = vpack.c.b16 %v903, %v900
          %v946 = vpack.c.b16 %v904, %v901
          %v947 = vpack.c.b16 %v908, %v905
          %v948 = vpack.c.b16 %v909, %v906
          %v949 = vpack.c.b16 %v910, %v907
          %v950 = vpack.c.b16 %v914, %v911
          %v951 = vpack.c.b16 %v915, %v912
          %v952 = vpack.c.b16 %v916, %v913
          %v953 = vpack.c.b16 %v920, %v917
          %v954 = vpack.c.b16 %v921, %v918
          %v955 = vpack.c.b16 %v922, %v919
          %v956 = vpack.c.b16 %v926, %v923
          %v957 = vpack.c.b16 %v927, %v924
          %v958 = vpack.c.b16 %v928, %v925
          %v959 = vpack.c.b16 %v932, %v929
          %v960 = vpack.c.b16 %v933, %v930
          %v961 = vpack.c.b16 %v934, %v931
          %v962 = vpack.c.b16 %v938, %v935
          %v963 = vpack.c.b16 %v939, %v936
          %v964 = vpack.c.b16 %v940, %v937
          %989 = vmatprep.subr.bf16.mxu0 %v942
          %990 = vmatpush1.bf16.msra.mxu0 %v941
          %991 = vmatprep.subr.bf16.mxu0 %v945
          %992 = vmatpush1.bf16.msra.mxu0 %v944
          %993 = vmatprep.subr.bf16.mxu0 %v948
          %994 = vmatpush1.bf16.msra.mxu0 %v947
          %995 = vmatprep.subr.bf16.mxu0 %v951
          %996 = vmatpush1.bf16.msra.mxu0 %v950
          %997 = vmatprep.subr.bf16.mxu0 %v954
          %998 = vmatpush1.bf16.msra.mxu0 %v953
          %999 = vmatprep.subr.bf16.mxu0 %v957
          %1000 = vmatpush1.bf16.msra.mxu0 %v956
          %1001 = vmatprep.subr.bf16.mxu0 %v960
          %1002 = vmatpush1.bf16.msra.mxu0 %v959
          %1003 = vmatprep.subr.bf16.mxu0 %v963
          %1004 = vmatpush1.bf16.msra.mxu0 %v962
          %1005 = vmatprep.subr.bf16.mxu0 0
          %1006 = vmatpush1.bf16.msra.mxu0 0
          %1007 = vmatprep.subr.bf16.mxu0 0
          %1008 = vmatpush1.bf16.msra.mxu0 0
          %1009 = vmatprep.subr.bf16.mxu0 0
          %1010 = vmatpush1.bf16.msra.mxu0 0
          %1011 = vmatprep.subr.bf16.mxu0 0
          %1012 = vmatpush1.bf16.msra.mxu0 0
          %1013 = vmatprep.subr.bf16.mxu0 0
          %1014 = vmatpush1.bf16.msra.mxu0 0
          %1015 = vmatprep.subr.bf16.mxu0 0
          %1016 = vmatpush1.bf16.msra.mxu0 0
          %1017 = vmatprep.subr.bf16.mxu0 0
          %1018 = vmatpush1.bf16.msra.mxu0 0
          %1019 = vmatprep.subr.bf16.mxu0 0
          %1020 = vmatpush1.bf16.msra.mxu0 0
          %1021 = vmatprep.mubr.bf16.mxu0 0
          %1022 = vmatmul.mubr.bf16.gmra.mrb[0].mxu0 %v796
          %v1023 = vpop.f32.mrb[0].mxu0
          %v1024 = vadd.f32 %v849, %v1023
          %v1025 = vpop.f32.mrb[0].mxu0
          %v1026 = vadd.f32 %v853, %v1025
          %v1027 = vpop.f32.mrb[0].mxu0
          %v1028 = vadd.f32 %v849, %v1027
          %v1029 = vpop.f32.mrb[0].mxu0
          %v1030 = vadd.f32 %v853, %v1029
          %1031 = vmatprep.mubr.bf16.mxu0 0
          %1032 = vmatmul.mubr.bf16.gmra.mrb[0].mxu0 %v797
          %v1033 = vpop.f32.mrb[0].mxu0
          %v1034 = vadd.f32 %v849, %v1033
          %v1035 = vpop.f32.mrb[0].mxu0
          %v1036 = vadd.f32 %v853, %v1035
          %v1037 = vpop.f32.mrb[0].mxu0
          %v1038 = vadd.f32 %v849, %v1037
          %v1039 = vpop.f32.mrb[0].mxu0
          %v1040 = vadd.f32 %v853, %v1039
          %1041 = vmatprep.mubr.bf16.mxu0 0
          %1042 = vmatmul.mubr.bf16.gmra.mrb[0].mxu0 %v798
          %v1043 = vpop.f32.mrb[0].mxu0
          %v1044 = vadd.f32 %v849, %v1043
          %v1045 = vpop.f32.mrb[0].mxu0
          %v1046 = vadd.f32 %v853, %v1045
          %v1047 = vpop.f32.mrb[0].mxu0
          %v1048 = vadd.f32 %v849, %v1047
          %v1049 = vpop.f32.mrb[0].mxu0
          %v1050 = vadd.f32 %v853, %v1049
          %1051 = vmatprep.mubr.bf16.mxu0 0
          %1052 = vmatmul.mubr.bf16.gmra.mrb[0].mxu0 %v799
          %v1053 = vpop.f32.mrb[0].mxu0
          %v1054 = vadd.f32 %v849, %v1053
          %v1055 = vpop.f32.mrb[0].mxu0
          %v1056 = vadd.f32 %v853, %v1055
          %v1057 = vpop.f32.mrb[0].mxu0
          %v1058 = vadd.f32 %v849, %v1057
          %v1059 = vpop.f32.mrb[0].mxu0
          %v1060 = vadd.f32 %v853, %v1059
          %1061 = vmatprep.mubr.bf16.mxu0 0
          %1062 = vmatmul.mubr.bf16.gmra.mrb[0].mxu0 %v800
          %v1063 = vpop.f32.mrb[0].mxu0
          %v1064 = vadd.f32 %v849, %v1063
          %v1065 = vpop.f32.mrb[0].mxu0
          %v1066 = vadd.f32 %v853, %v1065
          %v1067 = vpop.f32.mrb[0].mxu0
          %v1068 = vadd.f32 %v849, %v1067
          %v1069 = vpop.f32.mrb[0].mxu0
          %v1070 = vadd.f32 %v853, %v1069
          %1071 = vmatprep.mubr.bf16.mxu0 0
          %1072 = vmatmul.mubr.bf16.gmra.mrb[0].mxu0 %v801
          %v1073 = vpop.f32.mrb[0].mxu0
          %v1074 = vadd.f32 %v849, %v1073
          %v1075 = vpop.f32.mrb[0].mxu0
          %v1076 = vadd.f32 %v853, %v1075
          %v1077 = vpop.f32.mrb[0].mxu0
          %v1078 = vadd.f32 %v849, %v1077
          %v1079 = vpop.f32.mrb[0].mxu0
          %v1080 = vadd.f32 %v853, %v1079
          %1081 = vmatprep.mubr.bf16.mxu0 0
          %1082 = vmatmul.mubr.bf16.gmra.mrb[0].mxu0 %v802
          %v1083 = vpop.f32.mrb[0].mxu0
          %v1084 = vadd.f32 %v849, %v1083
          %v1085 = vpop.f32.mrb[0].mxu0
          %v1086 = vadd.f32 %v853, %v1085
          %v1087 = vpop.f32.mrb[0].mxu0
          %v1088 = vadd.f32 %v849, %v1087
          %v1089 = vpop.f32.mrb[0].mxu0
          %v1090 = vadd.f32 %v853, %v1089
          %1091 = vmatprep.mubr.bf16.mxu0 0
          %1092 = vmatmul.mubr.bf16.gmra.mrb[0].mxu0 %v803
          %v1093 = vpop.f32.mrb[0].mxu0
          %v1094 = vadd.f32 %v849, %v1093
          %v1095 = vpop.f32.mrb[0].mxu0
          %v1096 = vadd.f32 %v853, %v1095
          %v1097 = vpop.f32.mrb[0].mxu0
          %v1098 = vadd.f32 %v849, %v1097
          %v1099 = vpop.f32.mrb[0].mxu0
          %v1100 = vadd.f32 %v853, %v1099
          %1101 = vmatprep.mubr.bf16.mxu0 0
          %1102 = vmatmul.mubr.bf16.gmra.mrb[0].mxu0 %v804
          %v1103 = vpop.f32.mrb[0].mxu0
          %v1104 = vadd.f32 %v849, %v1103
          %v1105 = vpop.f32.mrb[0].mxu0
          %v1106 = vadd.f32 %v853, %v1105
          %v1107 = vpop.f32.mrb[0].mxu0
          %v1108 = vadd.f32 %v849, %v1107
          %v1109 = vpop.f32.mrb[0].mxu0
          %v1110 = vadd.f32 %v853, %v1109
          %1111 = vmatprep.mubr.bf16.mxu0 0
          %1112 = vmatmul.mubr.bf16.gmra.mrb[0].mxu0 %v805
          %v1113 = vpop.f32.mrb[0].mxu0
          %v1114 = vadd.f32 %v849, %v1113
          %v1115 = vpop.f32.mrb[0].mxu0
          %v1116 = vadd.f32 %v853, %v1115
          %v1117 = vpop.f32.mrb[0].mxu0
          %v1118 = vadd.f32 %v849, %v1117
          %v1119 = vpop.f32.mrb[0].mxu0
          %v1120 = vadd.f32 %v853, %v1119
          %1121 = vmatprep.mubr.bf16.mxu0 0
          %1122 = vmatmul.mubr.bf16.gmra.mrb[0].mxu0 %v806
          %v1123 = vpop.f32.mrb[0].mxu0
          %v1124 = vadd.f32 %v849, %v1123
          %v1125 = vpop.f32.mrb[0].mxu0
          %v1126 = vadd.f32 %v853, %v1125
          %v1127 = vpop.f32.mrb[0].mxu0
          %v1128 = vadd.f32 %v849, %v1127
          %v1129 = vpop.f32.mrb[0].mxu0
          %v1130 = vadd.f32 %v853, %v1129
          %1131 = vmatprep.mubr.bf16.mxu0 0
          %1132 = vmatmul.mubr.bf16.gmra.mrb[0].mxu0 %v807
          %v1133 = vpop.f32.mrb[0].mxu0
          %v1134 = vadd.f32 %v849, %v1133
          %v1135 = vpop.f32.mrb[0].mxu0
          %v1136 = vadd.f32 %v853, %v1135
          %v1137 = vpop.f32.mrb[0].mxu0
          %v1138 = vadd.f32 %v849, %v1137
          %v1139 = vpop.f32.mrb[0].mxu0
          %v1140 = vadd.f32 %v853, %v1139
          %1141 = vmatprep.mubr.bf16.mxu0 0
          %1142 = vmatmul.mubr.bf16.gmra.mrb[0].mxu0 %v808
          %v1143 = vpop.f32.mrb[0].mxu0
          %v1144 = vadd.f32 %v849, %v1143
          %v1145 = vpop.f32.mrb[0].mxu0
          %v1146 = vadd.f32 %v853, %v1145
          %v1147 = vpop.f32.mrb[0].mxu0
          %v1148 = vadd.f32 %v849, %v1147
          %v1149 = vpop.f32.mrb[0].mxu0
          %v1150 = vadd.f32 %v853, %v1149
          %1151 = vmatprep.mubr.bf16.mxu0 0
          %1152 = vmatmul.mubr.bf16.gmra.mrb[0].mxu0 %v809
          %v1153 = vpop.f32.mrb[0].mxu0
          %v1154 = vadd.f32 %v849, %v1153
          %v1155 = vpop.f32.mrb[0].mxu0
          %v1156 = vadd.f32 %v853, %v1155
          %v1157 = vpop.f32.mrb[0].mxu0
          %v1158 = vadd.f32 %v849, %v1157
          %v1159 = vpop.f32.mrb[0].mxu0
          %v1160 = vadd.f32 %v853, %v1159
          %1161 = vmatprep.mubr.bf16.mxu0 0
          %1162 = vmatmul.mubr.bf16.gmra.mrb[0].mxu0 %v810
          %v1163 = vpop.f32.mrb[0].mxu0
          %v1164 = vadd.f32 %v849, %v1163
          %v1165 = vpop.f32.mrb[0].mxu0
          %v1166 = vadd.f32 %v853, %v1165
          %v1167 = vpop.f32.mrb[0].mxu0
          %v1168 = vadd.f32 %v849, %v1167
          %v1169 = vpop.f32.mrb[0].mxu0
          %v1170 = vadd.f32 %v853, %v1169
          %1171 = vmatprep.mubr.bf16.mxu0 0
          %1172 = vmatmul.mubr.bf16.gmra.mrb[0].mxu0 %v811
          %v1173 = vpop.f32.mrb[0].mxu0
          %v1174 = vadd.f32 %v849, %v1173
          %v1175 = vpop.f32.mrb[0].mxu0
          %v1176 = vadd.f32 %v853, %v1175
          %v1177 = vpop.f32.mrb[0].mxu0
          %v1178 = vadd.f32 %v849, %v1177
          %v1179 = vpop.f32.mrb[0].mxu0
          %v1180 = vadd.f32 %v853, %v1179
          %1181 = vdwg.mxu0
          %1182 = vmatprep.subr.bf16.mxu0 0
          %1183 = vmatpush1.bf16.msra.mxu0 %v943
          %1184 = vmatprep.subr.bf16.mxu0 0
          %1185 = vmatpush1.bf16.msra.mxu0 %v946
          %1186 = vmatprep.subr.bf16.mxu0 0
          %1187 = vmatpush1.bf16.msra.mxu0 %v949
          %1188 = vmatprep.subr.bf16.mxu0 0
          %1189 = vmatpush1.bf16.msra.mxu0 %v952
          %1190 = vmatprep.subr.bf16.mxu0 0
          %1191 = vmatpush1.bf16.msra.mxu0 %v955
          %1192 = vmatprep.subr.bf16.mxu0 0
          %1193 = vmatpush1.bf16.msra.mxu0 %v958
          %1194 = vmatprep.subr.bf16.mxu0 0
          %1195 = vmatpush1.bf16.msra.mxu0 %v961
          %1196 = vmatprep.subr.bf16.mxu0 0
          %1197 = vmatpush1.bf16.msra.mxu0 %v964
          %1198 = vmatprep.subr.bf16.mxu0 0
          %1199 = vmatpush1.bf16.msra.mxu0 0
          %1200 = vmatprep.subr.bf16.mxu0 0
          %1201 = vmatpush1.bf16.msra.mxu0 0
          %1202 = vmatprep.subr.bf16.mxu0 0
          %1203 = vmatpush1.bf16.msra.mxu0 0
          %1204 = vmatprep.subr.bf16.mxu0 0
          %1205 = vmatpush1.bf16.msra.mxu0 0
          %1206 = vmatprep.subr.bf16.mxu0 0
          %1207 = vmatpush1.bf16.msra.mxu0 0
          %1208 = vmatprep.subr.bf16.mxu0 0
          %1209 = vmatpush1.bf16.msra.mxu0 0
          %1210 = vmatprep.subr.bf16.mxu0 0
          %1211 = vmatpush1.bf16.msra.mxu0 0
          %1212 = vmatprep.subr.bf16.mxu0 0
          %1213 = vmatpush1.bf16.msra.mxu0 0
          %1214 = vmatprep.mubr.bf16.mxu0 0
          %1215 = vmatmul.mubr.bf16.gmra.mrb[0].mxu0 %v796
          %v1216 = vpop.f32.mrb[0].mxu0
          %v1217 = vadd.f32 %v857, %v1216
          %v1218 = vpop.f32.mrb[0].mxu0
          %v1219 = vpop.f32.mrb[0].mxu0
          %v1220 = vadd.f32 %v857, %v1219
          %v1221 = vpop.f32.mrb[0].mxu0
          %1222 = vmatprep.mubr.bf16.mxu0 0
          %1223 = vmatmul.mubr.bf16.gmra.mrb[0].mxu0 %v797
          %v1224 = vpop.f32.mrb[0].mxu0
          %v1225 = vadd.f32 %v857, %v1224
          %v1226 = vpop.f32.mrb[0].mxu0
          %v1227 = vpop.f32.mrb[0].mxu0
          %v1228 = vadd.f32 %v857, %v1227
          %v1229 = vpop.f32.mrb[0].mxu0
          %1230 = vmatprep.mubr.bf16.mxu0 0
          %1231 = vmatmul.mubr.bf16.gmra.mrb[0].mxu0 %v798
          %v1232 = vpop.f32.mrb[0].mxu0
          %v1233 = vadd.f32 %v857, %v1232
          %v1234 = vpop.f32.mrb[0].mxu0
          %v1235 = vpop.f32.mrb[0].mxu0
          %v1236 = vadd.f32 %v857, %v1235
          %v1237 = vpop.f32.mrb[0].mxu0
          %1238 = vmatprep.mubr.bf16.mxu0 0
          %1239 = vmatmul.mubr.bf16.gmra.mrb[0].mxu0 %v799
          %v1240 = vpop.f32.mrb[0].mxu0
          %v1241 = vadd.f32 %v857, %v1240
          %v1242 = vpop.f32.mrb[0].mxu0
          %v1243 = vpop.f32.mrb[0].mxu0
          %v1244 = vadd.f32 %v857, %v1243
          %v1245 = vpop.f32.mrb[0].mxu0
          %1246 = vmatprep.mubr.bf16.mxu0 0
          %1247 = vmatmul.mubr.bf16.gmra.mrb[0].mxu0 %v800
          %v1248 = vpop.f32.mrb[0].mxu0
          %v1249 = vadd.f32 %v857, %v1248
          %v1250 = vpop.f32.mrb[0].mxu0
          %v1251 = vpop.f32.mrb[0].mxu0
          %v1252 = vadd.f32 %v857, %v1251
          %v1253 = vpop.f32.mrb[0].mxu0
          %1254 = vmatprep.mubr.bf16.mxu0 0
          %1255 = vmatmul.mubr.bf16.gmra.mrb[0].mxu0 %v801
          %v1256 = vpop.f32.mrb[0].mxu0
          %v1257 = vadd.f32 %v857, %v1256
          %v1258 = vpop.f32.mrb[0].mxu0
          %v1259 = vpop.f32.mrb[0].mxu0
          %v1260 = vadd.f32 %v857, %v1259
          %v1261 = vpop.f32.mrb[0].mxu0
          %1262 = vmatprep.mubr.bf16.mxu0 0
          %1263 = vmatmul.mubr.bf16.gmra.mrb[0].mxu0 %v802
          %v1264 = vpop.f32.mrb[0].mxu0
          %v1265 = vadd.f32 %v857, %v1264
          %v1266 = vpop.f32.mrb[0].mxu0
          %v1267 = vpop.f32.mrb[0].mxu0
          %v1268 = vadd.f32 %v857, %v1267
          %v1269 = vpop.f32.mrb[0].mxu0
          %1270 = vmatprep.mubr.bf16.mxu0 0
          %1271 = vmatmul.mubr.bf16.gmra.mrb[0].mxu0 %v803
          %v1272 = vpop.f32.mrb[0].mxu0
          %v1273 = vadd.f32 %v857, %v1272
          %v1274 = vpop.f32.mrb[0].mxu0
          %v1275 = vpop.f32.mrb[0].mxu0
          %v1276 = vadd.f32 %v857, %v1275
          %v1277 = vpop.f32.mrb[0].mxu0
          %1278 = vmatprep.mubr.bf16.mxu0 0
          %1279 = vmatmul.mubr.bf16.gmra.mrb[0].mxu0 %v804
          %v1280 = vpop.f32.mrb[0].mxu0
          %v1281 = vadd.f32 %v857, %v1280
          %v1282 = vpop.f32.mrb[0].mxu0
          %v1283 = vpop.f32.mrb[0].mxu0
          %v1284 = vadd.f32 %v857, %v1283
          %v1285 = vpop.f32.mrb[0].mxu0
          %1286 = vmatprep.mubr.bf16.mxu0 0
          %1287 = vmatmul.mubr.bf16.gmra.mrb[0].mxu0 %v805
          %v1288 = vpop.f32.mrb[0].mxu0
          %v1289 = vadd.f32 %v857, %v1288
          %v1290 = vpop.f32.mrb[0].mxu0
          %v1291 = vpop.f32.mrb[0].mxu0
          %v1292 = vadd.f32 %v857, %v1291
          %v1293 = vpop.f32.mrb[0].mxu0
          %1294 = vmatprep.mubr.bf16.mxu0 0
          %1295 = vmatmul.mubr.bf16.gmra.mrb[0].mxu0 %v806
          %v1296 = vpop.f32.mrb[0].mxu0
          %v1297 = vadd.f32 %v857, %v1296
          %v1298 = vpop.f32.mrb[0].mxu0
          %v1299 = vpop.f32.mrb[0].mxu0
          %v1300 = vadd.f32 %v857, %v1299
          %v1301 = vpop.f32.mrb[0].mxu0
          %1302 = vmatprep.mubr.bf16.mxu0 0
          %1303 = vmatmul.mubr.bf16.gmra.mrb[0].mxu0 %v807
          %v1304 = vpop.f32.mrb[0].mxu0
          %v1305 = vadd.f32 %v857, %v1304
          %v1306 = vpop.f32.mrb[0].mxu0
          %v1307 = vpop.f32.mrb[0].mxu0
          %v1308 = vadd.f32 %v857, %v1307
          %v1309 = vpop.f32.mrb[0].mxu0
          %1310 = vmatprep.mubr.bf16.mxu0 0
          %1311 = vmatmul.mubr.bf16.gmra.mrb[0].mxu0 %v808
          %v1312 = vpop.f32.mrb[0].mxu0
          %v1313 = vadd.f32 %v857, %v1312
          %v1314 = vpop.f32.mrb[0].mxu0
          %v1315 = vpop.f32.mrb[0].mxu0
          %v1316 = vadd.f32 %v857, %v1315
          %v1317 = vpop.f32.mrb[0].mxu0
          %1318 = vmatprep.mubr.bf16.mxu0 0
          %1319 = vmatmul.mubr.bf16.gmra.mrb[0].mxu0 %v809
          %v1320 = vpop.f32.mrb[0].mxu0
          %v1321 = vadd.f32 %v857, %v1320
          %v1322 = vpop.f32.mrb[0].mxu0
          %v1323 = vpop.f32.mrb[0].mxu0
          %v1324 = vadd.f32 %v857, %v1323
          %v1325 = vpop.f32.mrb[0].mxu0
          %1326 = vmatprep.mubr.bf16.mxu0 0
          %1327 = vmatmul.mubr.bf16.gmra.mrb[0].mxu0 %v810
          %v1328 = vpop.f32.mrb[0].mxu0
          %v1329 = vadd.f32 %v857, %v1328
          %v1330 = vpop.f32.mrb[0].mxu0
          %v1331 = vpop.f32.mrb[0].mxu0
          %v1332 = vadd.f32 %v857, %v1331
          %v1333 = vpop.f32.mrb[0].mxu0
          %1334 = vmatprep.mubr.bf16.mxu0 0
          %1335 = vmatmul.mubr.bf16.gmra.mrb[0].mxu0 %v811
          %v1336 = vpop.f32.mrb[0].mxu0
          %v1337 = vadd.f32 %v857, %v1336
          %v1338 = vpop.f32.mrb[0].mxu0
          %v1339 = vpop.f32.mrb[0].mxu0
          %v1340 = vadd.f32 %v857, %v1339
          %v1341 = vpop.f32.mrb[0].mxu0
          %1342 = vdwg.mxu0
          %v1343 = vpack.c.bf16 %v1028, %v1024
          %v1344 = vpack.c.bf16 %v1030, %v1026
          %v1345 = vpack.c.bf16 %v1220, %v1217
          %v1346 = vpack.c.bf16 %v1038, %v1034
          %v1347 = vpack.c.bf16 %v1040, %v1036
          %v1348 = vpack.c.bf16 %v1228, %v1225
          %v1349 = vpack.c.bf16 %v1048, %v1044
          %v1350 = vpack.c.bf16 %v1050, %v1046
          %v1351 = vpack.c.bf16 %v1236, %v1233
          %v1352 = vpack.c.bf16 %v1058, %v1054
          %v1353 = vpack.c.bf16 %v1060, %v1056
          %v1354 = vpack.c.bf16 %v1244, %v1241
          %v1355 = vpack.c.bf16 %v1068, %v1064
          %v1356 = vpack.c.bf16 %v1070, %v1066
          %v1357 = vpack.c.bf16 %v1252, %v1249
          %v1358 = vpack.c.bf16 %v1078, %v1074
          %v1359 = vpack.c.bf16 %v1080, %v1076
          %v1360 = vpack.c.bf16 %v1260, %v1257
          %v1361 = vpack.c.bf16 %v1088, %v1084
          %v1362 = vpack.c.bf16 %v1090, %v1086
          %v1363 = vpack.c.bf16 %v1268, %v1265
          %v1364 = vpack.c.bf16 %v1098, %v1094
          %v1365 = vpack.c.bf16 %v1100, %v1096
          %v1366 = vpack.c.bf16 %v1276, %v1273
          %v1367 = vpack.c.bf16 %v1108, %v1104
          %v1368 = vpack.c.bf16 %v1110, %v1106
          %v1369 = vpack.c.bf16 %v1284, %v1281
          %v1370 = vpack.c.bf16 %v1118, %v1114
          %v1371 = vpack.c.bf16 %v1120, %v1116
          %v1372 = vpack.c.bf16 %v1292, %v1289
          %v1373 = vpack.c.bf16 %v1128, %v1124
          %v1374 = vpack.c.bf16 %v1130, %v1126
          %v1375 = vpack.c.bf16 %v1300, %v1297
          %v1376 = vpack.c.bf16 %v1138, %v1134
          %v1377 = vpack.c.bf16 %v1140, %v1136
          %v1378 = vpack.c.bf16 %v1308, %v1305
          %v1379 = vpack.c.bf16 %v1148, %v1144
          %v1380 = vpack.c.bf16 %v1150, %v1146
          %v1381 = vpack.c.bf16 %v1316, %v1313
          %v1382 = vpack.c.bf16 %v1158, %v1154
          %v1383 = vpack.c.bf16 %v1160, %v1156
          %v1384 = vpack.c.bf16 %v1324, %v1321
          %v1385 = vpack.c.bf16 %v1168, %v1164
          %v1386 = vpack.c.bf16 %v1170, %v1166
          %v1387 = vpack.c.bf16 %v1332, %v1329
          %v1388 = vpack.c.bf16 %v1178, %v1174
          %v1389 = vpack.c.bf16 %v1180, %v1176
          %v1390 = vpack.c.bf16 %v1340, %v1337
          %1391 = vst [vmem:[#allocation2] sm:$0xff] %v1343
          %1392 = vst [vmem:[#allocation2 + $0x8] sm:$0xff] %v1344
          %1393 = vst [vmem:[#allocation2 + $0x10] sm:$0xff] %v1345
          %1394 = vst [vmem:[#allocation2 + $0x18] sm:$0xff] %v1346
          %1395 = vst [vmem:[#allocation2 + $0x20] sm:$0xff] %v1347
          %1396 = vst [vmem:[#allocation2 + $0x28] sm:$0xff] %v1348
          %1397 = vst [vmem:[#allocation2 + $0x30] sm:$0xff] %v1349
          %1398 = vst [vmem:[#allocation2 + $0x38] sm:$0xff] %v1350
          %1399 = vst [vmem:[#allocation2 + $0x40] sm:$0xff] %v1351
          %1400 = vst [vmem:[#allocation2 + $0x48] sm:$0xff] %v1352
          %1401 = vst [vmem:[#allocation2 + $0x50] sm:$0xff] %v1353
          %1402 = vst [vmem:[#allocation2 + $0x58] sm:$0xff] %v1354
          %1403 = vst [vmem:[#allocation2 + $0x60] sm:$0xff] %v1355
          %1404 = vst [vmem:[#allocation2 + $0x68] sm:$0xff] %v1356
          %1405 = vst [vmem:[#allocation2 + $0x70] sm:$0xff] %v1357
          %1406 = vst [vmem:[#allocation2 + $0x78] sm:$0xff] %v1358
          %1407 = vst [vmem:[#allocation2 + $0x80] sm:$0xff] %v1359
          %1408 = vst [vmem:[#allocation2 + $0x88] sm:$0xff] %v1360
          %1409 = vst [vmem:[#allocation2 + $0x90] sm:$0xff] %v1361
          %1410 = vst [vmem:[#allocation2 + $0x98] sm:$0xff] %v1362
          %1411 = vst [vmem:[#allocation2 + $0xa0] sm:$0xff] %v1363
          %1412 = vst [vmem:[#allocation2 + $0xa8] sm:$0xff] %v1364
          %1413 = vst [vmem:[#allocation2 + $0xb0] sm:$0xff] %v1365
          %1414 = vst [vmem:[#allocation2 + $0xb8] sm:$0xff] %v1366
          %1415 = vst [vmem:[#allocation2 + $0xc0] sm:$0xff] %v1367
          %1416 = vst [vmem:[#allocation2 + $0xc8] sm:$0xff] %v1368
          %1417 = vst [vmem:[#allocation2 + $0xd0] sm:$0xff] %v1369
          %1418 = vst [vmem:[#allocation2 + $0xd8] sm:$0xff] %v1370
          %1419 = vst [vmem:[#allocation2 + $0xe0] sm:$0xff] %v1371
          %1420 = vst [vmem:[#allocation2 + $0xe8] sm:$0xff] %v1372
          %1421 = vst [vmem:[#allocation2 + $0xf0] sm:$0xff] %v1373
          %1422 = vst [vmem:[#allocation2 + $0xf8] sm:$0xff] %v1374
          %1423 = vst [vmem:[#allocation2 + $0x100] sm:$0xff] %v1375
          %1424 = vst [vmem:[#allocation2 + $0x108] sm:$0xff] %v1376
          %1425 = vst [vmem:[#allocation2 + $0x110] sm:$0xff] %v1377
          %1426 = vst [vmem:[#allocation2 + $0x118] sm:$0xff] %v1378
          %1427 = vst [vmem:[#allocation2 + $0x120] sm:$0xff] %v1379
          %1428 = vst [vmem:[#allocation2 + $0x128] sm:$0xff] %v1380
          %1429 = vst [vmem:[#allocation2 + $0x130] sm:$0xff] %v1381
          %1430 = vst [vmem:[#allocation2 + $0x138] sm:$0xff] %v1382
          %1431 = vst [vmem:[#allocation2 + $0x140] sm:$0xff] %v1383
          %1432 = vst [vmem:[#allocation2 + $0x148] sm:$0xff] %v1384
          %1433 = vst [vmem:[#allocation2 + $0x150] sm:$0xff] %v1385
          %1434 = vst [vmem:[#allocation2 + $0x158] sm:$0xff] %v1386
          %1435 = vst [vmem:[#allocation2 + $0x160] sm:$0xff] %v1387
          %1436 = vst [vmem:[#allocation2 + $0x168] sm:$0xff] %v1388
          %1437 = vst [vmem:[#allocation2 + $0x170] sm:$0xff] %v1389
          %1438 = vst [vmem:[#allocation2 + $0x178] sm:$0xff] %v1390
        $region72: #{tpu_custom_call.1} parent=51 // pred_fallthru
          _
        %s1439 = smul.u32 %s32, 128
        %s1440 = sshra.s32 %s1439, 4
        %s1441 = sand.u32 %s1439, 15
        %s1442 = smul.u32 %s1440, 3
        %s1443 = smul.addr %s1442, 8
        %s1444 = scalar_lea.vmem [#allocation2], %s1443
        %v1445 = vld [vmem:[%s1444] sm:$0xff]
        %v1446 = vld [vmem:[%s1444 + $0x18] sm:$0xff]
        %v1447 = vld [vmem:[%s1444 + $0x30] sm:$0xff]
        %v1448 = vld [vmem:[%s1444 + $0x48] sm:$0xff]
        %v1449 = vld [vmem:[%s1444 + $0x60] sm:$0xff]
        %v1450 = vld [vmem:[%s1444 + $0x78] sm:$0xff]
        %v1451 = vld [vmem:[%s1444 + $0x90] sm:$0xff]
        %v1452 = vld [vmem:[%s1444 + $0xa8] sm:$0xff]
        %v1453 = vld [vmem:[#allocation2 + $0x8] sm:$0xff]
        %v1454 = vld [vmem:[#allocation2 + $0x20] sm:$0xff]
        %v1455 = vld [vmem:[#allocation2 + $0x38] sm:$0xff]
        %v1456 = vld [vmem:[#allocation2 + $0x50] sm:$0xff]
        %v1457 = vld [vmem:[#allocation2 + $0x68] sm:$0xff]
        %v1458 = vld [vmem:[#allocation2 + $0x80] sm:$0xff]
        %v1459 = vld [vmem:[#allocation2 + $0x98] sm:$0xff]
        %v1460 = vld [vmem:[#allocation2 + $0xb0] sm:$0xff]
        %v1461 = vld [vmem:[#allocation2 + $0xc8] sm:$0xff]
        %v1462 = vld [vmem:[#allocation2 + $0xe0] sm:$0xff]
        %v1463 = vld [vmem:[#allocation2 + $0xf8] sm:$0xff]
        %v1464 = vld [vmem:[#allocation2 + $0x110] sm:$0xff]
        %v1465 = vld [vmem:[#allocation2 + $0x128] sm:$0xff]
        %v1466 = vld [vmem:[#allocation2 + $0x140] sm:$0xff]
        %v1467 = vld [vmem:[#allocation2 + $0x158] sm:$0xff]
        %v1468 = vld [vmem:[#allocation2 + $0x170] sm:$0xff]
        %v1469 = vld [vmem:[#allocation2 + $0x10] sm:$0xff]
        %v1470 = vld [vmem:[#allocation2 + $0x28] sm:$0xff]
        %v1471 = vld [vmem:[#allocation2 + $0x40] sm:$0xff]
        %v1472 = vld [vmem:[#allocation2 + $0x58] sm:$0xff]
        %v1473 = vld [vmem:[#allocation2 + $0x70] sm:$0xff]
        %v1474 = vld [vmem:[#allocation2 + $0x88] sm:$0xff]
        %v1475 = vld [vmem:[#allocation2 + $0xa0] sm:$0xff]
        %v1476 = vld [vmem:[#allocation2 + $0xb8] sm:$0xff]
        %v1477 = vld [vmem:[#allocation2 + $0xd0] sm:$0xff]
        %v1478 = vld [vmem:[#allocation2 + $0xe8] sm:$0xff]
        %v1479 = vld [vmem:[#allocation2 + $0x100] sm:$0xff]
        %v1480 = vld [vmem:[#allocation2 + $0x118] sm:$0xff]
        %v1481 = vld [vmem:[#allocation2 + $0x130] sm:$0xff]
        %v1482 = vld [vmem:[#allocation2 + $0x148] sm:$0xff]
        %v1483 = vld [vmem:[#allocation2 + $0x160] sm:$0xff]
        %v1484 = vld [vmem:[#allocation2 + $0x178] sm:$0xff]
        %1485 = vmatprep.subr.bf16.mxu0 0
        %1486 = vmatpush1.bf16.xpose.msra.mxu0 %v1453
        %1487 = vmatprep.subr.bf16.mxu0 0
        %1488 = vmatpush1.bf16.xpose.msra.mxu0 %v1454
        %1489 = vmatprep.subr.bf16.mxu0 0
        %1490 = vmatpush1.bf16.xpose.msra.mxu0 %v1455
        %1491 = vmatprep.subr.bf16.mxu0 0
        %1492 = vmatpush1.bf16.xpose.msra.mxu0 %v1456
        %1493 = vmatprep.subr.bf16.mxu0 0
        %1494 = vmatpush1.bf16.xpose.msra.mxu0 %v1457
        %1495 = vmatprep.subr.bf16.mxu0 0
        %1496 = vmatpush1.bf16.xpose.msra.mxu0 %v1458
        %1497 = vmatprep.subr.bf16.mxu0 0
        %1498 = vmatpush1.bf16.xpose.msra.mxu0 %v1459
        %1499 = vmatprep.subr.bf16.mxu0 0
        %1500 = vmatpush1.bf16.xpose.msra.mxu0 %v1460
        %1501 = vmatprep.subr.bf16.mxu0 0
        %1502 = vmatpush1.bf16.xpose.msra.mxu0 %v1461
        %1503 = vmatprep.subr.bf16.mxu0 0
        %1504 = vmatpush1.bf16.xpose.msra.mxu0 %v1462
        %1505 = vmatprep.subr.bf16.mxu0 0
        %1506 = vmatpush1.bf16.xpose.msra.mxu0 %v1463
        %1507 = vmatprep.subr.bf16.mxu0 0
        %1508 = vmatpush1.bf16.xpose.msra.mxu0 %v1464
        %1509 = vmatprep.subr.bf16.mxu0 0
        %1510 = vmatpush1.bf16.xpose.msra.mxu0 %v1465
        %1511 = vmatprep.subr.bf16.mxu0 0
        %1512 = vmatpush1.bf16.xpose.msra.mxu0 %v1466
        %1513 = vmatprep.subr.bf16.mxu0 0
        %1514 = vmatpush1.bf16.xpose.msra.mxu0 %v1467
        %1515 = vmatprep.subr.bf16.mxu0 0
        %1516 = vmatpush1.bf16.xpose.msra.mxu0 %v1468
        %1517 = vmatprep.mubr.bf16.mxu0 0
        %1518 = vmatmul.mubr.bf16.gmra.mrb[0].mxu0 %v1445
        %v1519 = vpop.f32.mrb[0].mxu0
        %v1520 = vadd.f32 0.0, %v1519
        %v1521 = vpop.f32.mrb[0].mxu0
        %v1522 = vadd.f32 0.0, %v1521
        %v1523 = vpop.f32.mrb[0].mxu0
        %v1524 = vadd.f32 0.0, %v1523
        %v1525 = vpop.f32.mrb[0].mxu0
        %v1526 = vadd.f32 0.0, %v1525
        %1527 = vmatprep.mubr.bf16.mxu0 0
        %1528 = vmatmul.mubr.bf16.gmra.mrb[0].mxu0 %v1446
        %v1529 = vpop.f32.mrb[0].mxu0
        %v1530 = vadd.f32 0.0, %v1529
        %v1531 = vpop.f32.mrb[0].mxu0
        %v1532 = vadd.f32 0.0, %v1531
        %v1533 = vpop.f32.mrb[0].mxu0
        %v1534 = vadd.f32 0.0, %v1533
        %v1535 = vpop.f32.mrb[0].mxu0
        %v1536 = vadd.f32 0.0, %v1535
        %1537 = vmatprep.mubr.bf16.mxu0 0
        %1538 = vmatmul.mubr.bf16.gmra.mrb[0].mxu0 %v1447
        %v1539 = vpop.f32.mrb[0].mxu0
        %v1540 = vadd.f32 0.0, %v1539
        %v1541 = vpop.f32.mrb[0].mxu0
        %v1542 = vadd.f32 0.0, %v1541
        %v1543 = vpop.f32.mrb[0].mxu0
        %v1544 = vadd.f32 0.0, %v1543
        %v1545 = vpop.f32.mrb[0].mxu0
        %v1546 = vadd.f32 0.0, %v1545
        %1547 = vmatprep.mubr.bf16.mxu0 0
        %1548 = vmatmul.mubr.bf16.gmra.mrb[0].mxu0 %v1448
        %v1549 = vpop.f32.mrb[0].mxu0
        %v1550 = vadd.f32 0.0, %v1549
        %v1551 = vpop.f32.mrb[0].mxu0
        %v1552 = vadd.f32 0.0, %v1551
        %v1553 = vpop.f32.mrb[0].mxu0
        %v1554 = vadd.f32 0.0, %v1553
        %v1555 = vpop.f32.mrb[0].mxu0
        %v1556 = vadd.f32 0.0, %v1555
        %1557 = vmatprep.mubr.bf16.mxu0 0
        %1558 = vmatmul.mubr.bf16.gmra.mrb[0].mxu0 %v1449
        %v1559 = vpop.f32.mrb[0].mxu0
        %v1560 = vadd.f32 0.0, %v1559
        %v1561 = vpop.f32.mrb[0].mxu0
        %v1562 = vadd.f32 0.0, %v1561
        %v1563 = vpop.f32.mrb[0].mxu0
        %v1564 = vadd.f32 0.0, %v1563
        %v1565 = vpop.f32.mrb[0].mxu0
        %v1566 = vadd.f32 0.0, %v1565
        %1567 = vmatprep.mubr.bf16.mxu0 0
        %1568 = vmatmul.mubr.bf16.gmra.mrb[0].mxu0 %v1450
        %v1569 = vpop.f32.mrb[0].mxu0
        %v1570 = vadd.f32 0.0, %v1569
        %v1571 = vpop.f32.mrb[0].mxu0
        %v1572 = vadd.f32 0.0, %v1571
        %v1573 = vpop.f32.mrb[0].mxu0
        %v1574 = vadd.f32 0.0, %v1573
        %v1575 = vpop.f32.mrb[0].mxu0
        %v1576 = vadd.f32 0.0, %v1575
        %1577 = vmatprep.mubr.bf16.mxu0 0
        %1578 = vmatmul.mubr.bf16.gmra.mrb[0].mxu0 %v1451
        %v1579 = vpop.f32.mrb[0].mxu0
        %v1580 = vadd.f32 0.0, %v1579
        %v1581 = vpop.f32.mrb[0].mxu0
        %v1582 = vadd.f32 0.0, %v1581
        %v1583 = vpop.f32.mrb[0].mxu0
        %v1584 = vadd.f32 0.0, %v1583
        %v1585 = vpop.f32.mrb[0].mxu0
        %v1586 = vadd.f32 0.0, %v1585
        %1587 = vmatprep.mubr.bf16.mxu0 0
        %1588 = vmatmul.mubr.bf16.gmra.mrb[0].mxu0 %v1452
        %v1589 = vpop.f32.mrb[0].mxu0
        %v1590 = vadd.f32 0.0, %v1589
        %v1591 = vpop.f32.mrb[0].mxu0
        %v1592 = vadd.f32 0.0, %v1591
        %v1593 = vpop.f32.mrb[0].mxu0
        %v1594 = vadd.f32 0.0, %v1593
        %v1595 = vpop.f32.mrb[0].mxu0
        %v1596 = vadd.f32 0.0, %v1595
        %1597 = vdwg.mxu0
        %v1598 = vmax.f32 %v1520, %v1522
        %1599 = vmax.xlane.f32.xlu0 %v1598
        %v1600 = vpop.xlane.xlu0 %1599
        %v1601 = vmax.f32 %v1524, %v1526
        %1602 = vmax.xlane.f32.xlu0 %v1601
        %v1603 = vpop.xlane.xlu0 %1602
        %v1604 = vmax.f32 %v1530, %v1532
        %1605 = vmax.xlane.f32.xlu0 %v1604
        %v1606 = vpop.xlane.xlu0 %1605
        %v1607 = vmax.f32 %v1534, %v1536
        %1608 = vmax.xlane.f32.xlu0 %v1607
        %v1609 = vpop.xlane.xlu0 %1608
        %v1610 = vmax.f32 %v1540, %v1542
        %1611 = vmax.xlane.f32.xlu0 %v1610
        %v1612 = vpop.xlane.xlu0 %1611
        %v1613 = vmax.f32 %v1544, %v1546
        %1614 = vmax.xlane.f32.xlu0 %v1613
        %v1615 = vpop.xlane.xlu0 %1614
        %v1616 = vmax.f32 %v1550, %v1552
        %1617 = vmax.xlane.f32.xlu0 %v1616
        %v1618 = vpop.xlane.xlu0 %1617
        %v1619 = vmax.f32 %v1554, %v1556
        %1620 = vmax.xlane.f32.xlu0 %v1619
        %v1621 = vpop.xlane.xlu0 %1620
        %v1622 = vmax.f32 %v1560, %v1562
        %1623 = vmax.xlane.f32.xlu0 %v1622
        %v1624 = vpop.xlane.xlu0 %1623
        %v1625 = vmax.f32 %v1564, %v1566
        %1626 = vmax.xlane.f32.xlu0 %v1625
        %v1627 = vpop.xlane.xlu0 %1626
        %v1628 = vmax.f32 %v1570, %v1572
        %1629 = vmax.xlane.f32.xlu0 %v1628
        %v1630 = vpop.xlane.xlu0 %1629
        %v1631 = vmax.f32 %v1574, %v1576
        %1632 = vmax.xlane.f32.xlu0 %v1631
        %v1633 = vpop.xlane.xlu0 %1632
        %v1634 = vmax.f32 %v1580, %v1582
        %1635 = vmax.xlane.f32.xlu0 %v1634
        %v1636 = vpop.xlane.xlu0 %1635
        %v1637 = vmax.f32 %v1584, %v1586
        %1638 = vmax.xlane.f32.xlu0 %v1637
        %v1639 = vpop.xlane.xlu0 %1638
        %v1640 = vmax.f32 %v1590, %v1592
        %1641 = vmax.xlane.f32.xlu0 %v1640
        %v1642 = vpop.xlane.xlu0 %1641
        %v1643 = vmax.f32 %v1594, %v1596
        %1644 = vmax.xlane.f32.xlu0 %v1643
        %v1645 = vpop.xlane.xlu0 %1644
        %v1646 = vsub.f32 %v1520, %v1600
        %v1647 = vsub.f32 %v1522, %v1600
        %v1648 = vsub.f32 %v1524, %v1603
        %v1649 = vsub.f32 %v1526, %v1603
        %v1650 = vsub.f32 %v1530, %v1606
        %v1651 = vsub.f32 %v1532, %v1606
        %v1652 = vsub.f32 %v1534, %v1609
        %v1653 = vsub.f32 %v1536, %v1609
        %v1654 = vsub.f32 %v1540, %v1612
        %v1655 = vsub.f32 %v1542, %v1612
        %v1656 = vsub.f32 %v1544, %v1615
        %v1657 = vsub.f32 %v1546, %v1615
        %v1658 = vsub.f32 %v1550, %v1618
        %v1659 = vsub.f32 %v1552, %v1618
        %v1660 = vsub.f32 %v1554, %v1621
        %v1661 = vsub.f32 %v1556, %v1621
        %v1662 = vsub.f32 %v1560, %v1624
        %v1663 = vsub.f32 %v1562, %v1624
        %v1664 = vsub.f32 %v1564, %v1627
        %v1665 = vsub.f32 %v1566, %v1627
        %v1666 = vsub.f32 %v1570, %v1630
        %v1667 = vsub.f32 %v1572, %v1630
        %v1668 = vsub.f32 %v1574, %v1633
        %v1669 = vsub.f32 %v1576, %v1633
        %v1670 = vsub.f32 %v1580, %v1636
        %v1671 = vsub.f32 %v1582, %v1636
        %v1672 = vsub.f32 %v1584, %v1639
        %v1673 = vsub.f32 %v1586, %v1639
        %v1674 = vsub.f32 %v1590, %v1642
        %v1675 = vsub.f32 %v1592, %v1642
        %v1676 = vsub.f32 %v1594, %v1645
        %v1677 = vsub.f32 %v1596, %v1645
        %v1678 = vmul.f32 %v1646, 1.442695
        %v1679 = vpow.pop %v1678
        %v1680 = vmul.f32 %v1647, 1.442695
        %v1681 = vpow.pop %v1680
        %v1682 = vmul.f32 %v1648, 1.442695
        %v1683 = vpow.pop %v1682
        %v1684 = vmul.f32 %v1649, 1.442695
        %v1685 = vpow.pop %v1684
        %v1686 = vmul.f32 %v1650, 1.442695
        %v1687 = vpow.pop %v1686
        %v1688 = vmul.f32 %v1651, 1.442695
        %v1689 = vpow.pop %v1688
        %v1690 = vmul.f32 %v1652, 1.442695
        %v1691 = vpow.pop %v1690
        %v1692 = vmul.f32 %v1653, 1.442695
        %v1693 = vpow.pop %v1692
        %v1694 = vmul.f32 %v1654, 1.442695
        %v1695 = vpow.pop %v1694
        %v1696 = vmul.f32 %v1655, 1.442695
        %v1697 = vpow.pop %v1696
        %v1698 = vmul.f32 %v1656, 1.442695
        %v1699 = vpow.pop %v1698
        %v1700 = vmul.f32 %v1657, 1.442695
        %v1701 = vpow.pop %v1700
        %v1702 = vmul.f32 %v1658, 1.442695
        %v1703 = vpow.pop %v1702
        %v1704 = vmul.f32 %v1659, 1.442695
        %v1705 = vpow.pop %v1704
        %v1706 = vmul.f32 %v1660, 1.442695
        %v1707 = vpow.pop %v1706
        %v1708 = vmul.f32 %v1661, 1.442695
        %v1709 = vpow.pop %v1708
        %v1710 = vmul.f32 %v1662, 1.442695
        %v1711 = vpow.pop %v1710
        %v1712 = vmul.f32 %v1663, 1.442695
        %v1713 = vpow.pop %v1712
        %v1714 = vmul.f32 %v1664, 1.442695
        %v1715 = vpow.pop %v1714
        %v1716 = vmul.f32 %v1665, 1.442695
        %v1717 = vpow.pop %v1716
        %v1718 = vmul.f32 %v1666, 1.442695
        %v1719 = vpow.pop %v1718
        %v1720 = vmul.f32 %v1667, 1.442695
        %v1721 = vpow.pop %v1720
        %v1722 = vmul.f32 %v1668, 1.442695
        %v1723 = vpow.pop %v1722
        %v1724 = vmul.f32 %v1669, 1.442695
        %v1725 = vpow.pop %v1724
        %v1726 = vmul.f32 %v1670, 1.442695
        %v1727 = vpow.pop %v1726
        %v1728 = vmul.f32 %v1671, 1.442695
        %v1729 = vpow.pop %v1728
        %v1730 = vmul.f32 %v1672, 1.442695
        %v1731 = vpow.pop %v1730
        %v1732 = vmul.f32 %v1673, 1.442695
        %v1733 = vpow.pop %v1732
        %v1734 = vmul.f32 %v1674, 1.442695
        %v1735 = vpow.pop %v1734
        %v1736 = vmul.f32 %v1675, 1.442695
        %v1737 = vpow.pop %v1736
        %v1738 = vmul.f32 %v1676, 1.442695
        %v1739 = vpow.pop %v1738
        %v1740 = vmul.f32 %v1677, 1.442695
        %v1741 = vpow.pop %v1740
        %v1742 = vadd.f32 %v1679, %v1681
        %1743 = vadd.xlane.f32.xlu0 %v1742
        %v1744 = vpop.xlane.xlu0 %1743
        %v1745 = vadd.f32 %v1683, %v1685
        %1746 = vadd.xlane.f32.xlu0 %v1745
        %v1747 = vpop.xlane.xlu0 %1746
        %v1748 = vadd.f32 %v1687, %v1689
        %1749 = vadd.xlane.f32.xlu0 %v1748
        %v1750 = vpop.xlane.xlu0 %1749
        %v1751 = vadd.f32 %v1691, %v1693
        %1752 = vadd.xlane.f32.xlu0 %v1751
        %v1753 = vpop.xlane.xlu0 %1752
        %v1754 = vadd.f32 %v1695, %v1697
        %1755 = vadd.xlane.f32.xlu0 %v1754
        %v1756 = vpop.xlane.xlu0 %1755
        %v1757 = vadd.f32 %v1699, %v1701
        %1758 = vadd.xlane.f32.xlu0 %v1757
        %v1759 = vpop.xlane.xlu0 %1758
        %v1760 = vadd.f32 %v1703, %v1705
        %1761 = vadd.xlane.f32.xlu0 %v1760
        %v1762 = vpop.xlane.xlu0 %1761
        %v1763 = vadd.f32 %v1707, %v1709
        %1764 = vadd.xlane.f32.xlu0 %v1763
        %v1765 = vpop.xlane.xlu0 %1764
        %v1766 = vadd.f32 %v1711, %v1713
        %1767 = vadd.xlane.f32.xlu0 %v1766
        %v1768 = vpop.xlane.xlu0 %1767
        %v1769 = vadd.f32 %v1715, %v1717
        %1770 = vadd.xlane.f32.xlu0 %v1769
        %v1771 = vpop.xlane.xlu0 %1770
        %v1772 = vadd.f32 %v1719, %v1721
        %1773 = vadd.xlane.f32.xlu0 %v1772
        %v1774 = vpop.xlane.xlu0 %1773
        %v1775 = vadd.f32 %v1723, %v1725
        %1776 = vadd.xlane.f32.xlu0 %v1775
        %v1777 = vpop.xlane.xlu0 %1776
        %v1778 = vadd.f32 %v1727, %v1729
        %1779 = vadd.xlane.f32.xlu0 %v1778
        %v1780 = vpop.xlane.xlu0 %1779
        %v1781 = vadd.f32 %v1731, %v1733
        %1782 = vadd.xlane.f32.xlu0 %v1781
        %v1783 = vpop.xlane.xlu0 %1782
        %v1784 = vadd.f32 %v1735, %v1737
        %1785 = vadd.xlane.f32.xlu0 %v1784
        %v1786 = vpop.xlane.xlu0 %1785
        %v1787 = vadd.f32 %v1739, %v1741
        %1788 = vadd.xlane.f32.xlu0 %v1787
        %v1789 = vpop.xlane.xlu0 %1788
        %v1790 = vpack.c.bf16 %v1683, %v1679
        %v1791 = vpack.c.bf16 %v1685, %v1681
        %v1792 = vpack.c.bf16 %v1691, %v1687
        %v1793 = vpack.c.bf16 %v1693, %v1689
        %v1794 = vpack.c.bf16 %v1699, %v1695
        %v1795 = vpack.c.bf16 %v1701, %v1697
        %v1796 = vpack.c.bf16 %v1707, %v1703
        %v1797 = vpack.c.bf16 %v1709, %v1705
        %v1798 = vpack.c.bf16 %v1715, %v1711
        %v1799 = vpack.c.bf16 %v1717, %v1713
        %v1800 = vpack.c.bf16 %v1723, %v1719
        %v1801 = vpack.c.bf16 %v1725, %v1721
        %v1802 = vpack.c.bf16 %v1731, %v1727
        %v1803 = vpack.c.bf16 %v1733, %v1729
        %v1804 = vpack.c.bf16 %v1739, %v1735
        %v1805 = vpack.c.bf16 %v1741, %v1737
        %1806 = vmatprep.subr.bf16.mxu0 0
        %1807 = vmatpush1.bf16.msra.mxu0 %v1469
        %1808 = vmatprep.subr.bf16.mxu0 0
        %1809 = vmatpush1.bf16.msra.mxu0 %v1470
        %1810 = vmatprep.subr.bf16.mxu0 0
        %1811 = vmatpush1.bf16.msra.mxu0 %v1471
        %1812 = vmatprep.subr.bf16.mxu0 0
        %1813 = vmatpush1.bf16.msra.mxu0 %v1472
        %1814 = vmatprep.subr.bf16.mxu0 0
        %1815 = vmatpush1.bf16.msra.mxu0 %v1473
        %1816 = vmatprep.subr.bf16.mxu0 0
        %1817 = vmatpush1.bf16.msra.mxu0 %v1474
        %1818 = vmatprep.subr.bf16.mxu0 0
        %1819 = vmatpush1.bf16.msra.mxu0 %v1475
        %1820 = vmatprep.subr.bf16.mxu0 0
        %1821 = vmatpush1.bf16.msra.mxu0 %v1476
        %1822 = vmatprep.subr.bf16.mxu0 0
        %1823 = vmatpush1.bf16.msra.mxu0 %v1477
        %1824 = vmatprep.subr.bf16.mxu0 0
        %1825 = vmatpush1.bf16.msra.mxu0 %v1478
        %1826 = vmatprep.subr.bf16.mxu0 0
        %1827 = vmatpush1.bf16.msra.mxu0 %v1479
        %1828 = vmatprep.subr.bf16.mxu0 0
        %1829 = vmatpush1.bf16.msra.mxu0 %v1480
        %1830 = vmatprep.subr.bf16.mxu0 0
        %1831 = vmatpush1.bf16.msra.mxu0 %v1481
        %1832 = vmatprep.subr.bf16.mxu0 0
        %1833 = vmatpush1.bf16.msra.mxu0 %v1482
        %1834 = vmatprep.subr.bf16.mxu0 0
        %1835 = vmatpush1.bf16.msra.mxu0 %v1483
        %1836 = vmatprep.subr.bf16.mxu0 0
        %1837 = vmatpush1.bf16.msra.mxu0 %v1484
        %1838 = vmatprep.mubr.bf16.mxu0 %v1791
        %1839 = vmatmul.mubr.bf16.gmra.mrb[0].mxu0 %v1790
        %v1840 = vpop.f32.mrb[0].mxu0
        %v1841 = vadd.f32 0.0, %v1840
        %v1842 = vpop.f32.mrb[0].mxu0
        %v1843 = vpop.f32.mrb[0].mxu0
        %v1844 = vadd.f32 0.0, %v1843
        %v1845 = vpop.f32.mrb[0].mxu0
        %1846 = vmatprep.mubr.bf16.mxu0 %v1793
        %1847 = vmatmul.mubr.bf16.gmra.mrb[0].mxu0 %v1792
        %v1848 = vpop.f32.mrb[0].mxu0
        %v1849 = vadd.f32 0.0, %v1848
        %v1850 = vpop.f32.mrb[0].mxu0
        %v1851 = vpop.f32.mrb[0].mxu0
        %v1852 = vadd.f32 0.0, %v1851
        %v1853 = vpop.f32.mrb[0].mxu0
        %1854 = vmatprep.mubr.bf16.mxu0 %v1795
        %1855 = vmatmul.mubr.bf16.gmra.mrb[0].mxu0 %v1794
        %v1856 = vpop.f32.mrb[0].mxu0
        %v1857 = vadd.f32 0.0, %v1856
        %v1858 = vpop.f32.mrb[0].mxu0
        %v1859 = vpop.f32.mrb[0].mxu0
        %v1860 = vadd.f32 0.0, %v1859
        %v1861 = vpop.f32.mrb[0].mxu0
        %1862 = vmatprep.mubr.bf16.mxu0 %v1797
        %1863 = vmatmul.mubr.bf16.gmra.mrb[0].mxu0 %v1796
        %v1864 = vpop.f32.mrb[0].mxu0
        %v1865 = vadd.f32 0.0, %v1864
        %v1866 = vpop.f32.mrb[0].mxu0
        %v1867 = vpop.f32.mrb[0].mxu0
        %v1868 = vadd.f32 0.0, %v1867
        %v1869 = vpop.f32.mrb[0].mxu0
        %1870 = vmatprep.mubr.bf16.mxu0 %v1799
        %1871 = vmatmul.mubr.bf16.gmra.mrb[0].mxu0 %v1798
        %v1872 = vpop.f32.mrb[0].mxu0
        %v1873 = vadd.f32 0.0, %v1872
        %v1874 = vpop.f32.mrb[0].mxu0
        %v1875 = vpop.f32.mrb[0].mxu0
        %v1876 = vadd.f32 0.0, %v1875
        %v1877 = vpop.f32.mrb[0].mxu0
        %1878 = vmatprep.mubr.bf16.mxu0 %v1801
        %1879 = vmatmul.mubr.bf16.gmra.mrb[0].mxu0 %v1800
        %v1880 = vpop.f32.mrb[0].mxu0
        %v1881 = vadd.f32 0.0, %v1880
        %v1882 = vpop.f32.mrb[0].mxu0
        %v1883 = vpop.f32.mrb[0].mxu0
        %v1884 = vadd.f32 0.0, %v1883
        %v1885 = vpop.f32.mrb[0].mxu0
        %1886 = vmatprep.mubr.bf16.mxu0 %v1803
        %1887 = vmatmul.mubr.bf16.gmra.mrb[0].mxu0 %v1802
        %v1888 = vpop.f32.mrb[0].mxu0
        %v1889 = vadd.f32 0.0, %v1888
        %v1890 = vpop.f32.mrb[0].mxu0
        %v1891 = vpop.f32.mrb[0].mxu0
        %v1892 = vadd.f32 0.0, %v1891
        %v1893 = vpop.f32.mrb[0].mxu0
        %1894 = vmatprep.mubr.bf16.mxu0 %v1805
        %1895 = vmatmul.mubr.bf16.gmra.mrb[0].mxu0 %v1804
        %v1896 = vpop.f32.mrb[0].mxu0
        %v1897 = vadd.f32 0.0, %v1896
        %v1898 = vpop.f32.mrb[0].mxu0
        %v1899 = vpop.f32.mrb[0].mxu0
        %v1900 = vadd.f32 0.0, %v1899
        %v1901 = vpop.f32.mrb[0].mxu0
        %1902 = vdwg.mxu0
        %v1903 = vrcp.pop %v1744
        %v1904 = vrcp.pop %v1747
        %v1905 = vrcp.pop %v1750
        %v1906 = vrcp.pop %v1753
        %v1907 = vrcp.pop %v1756
        %v1908 = vrcp.pop %v1759
        %v1909 = vrcp.pop %v1762
        %v1910 = vrcp.pop %v1765
        %v1911 = vrcp.pop %v1768
        %v1912 = vrcp.pop %v1771
        %v1913 = vrcp.pop %v1774
        %v1914 = vrcp.pop %v1777
        %v1915 = vrcp.pop %v1780
        %v1916 = vrcp.pop %v1783
        %v1917 = vrcp.pop %v1786
        %v1918 = vrcp.pop %v1789
        %v1919 = vmul.f32 %v1841, %v1903
        %v1920 = vmul.f32 %v1844, %v1904
        %v1921 = vmul.f32 %v1849, %v1905
        %v1922 = vmul.f32 %v1852, %v1906
        %v1923 = vmul.f32 %v1857, %v1907
        %v1924 = vmul.f32 %v1860, %v1908
        %v1925 = vmul.f32 %v1865, %v1909
        %v1926 = vmul.f32 %v1868, %v1910
        %v1927 = vmul.f32 %v1873, %v1911
        %v1928 = vmul.f32 %v1876, %v1912
        %v1929 = vmul.f32 %v1881, %v1913
        %v1930 = vmul.f32 %v1884, %v1914
        %v1931 = vmul.f32 %v1889, %v1915
        %v1932 = vmul.f32 %v1892, %v1916
        %v1933 = vmul.f32 %v1897, %v1917
        %v1934 = vmul.f32 %v1900, %v1918
        %v1935 = vpack.c.bf16 %v1920, %v1919
        %v1936 = vpack.c.bf16 %v1922, %v1921
        %v1937 = vpack.c.bf16 %v1924, %v1923
        %v1938 = vpack.c.bf16 %v1926, %v1925
        %v1939 = vpack.c.bf16 %v1928, %v1927
        %v1940 = vpack.c.bf16 %v1930, %v1929
        %v1941 = vpack.c.bf16 %v1932, %v1931
        %v1942 = vpack.c.bf16 %v1934, %v1933
        %v1943 = vld [vmem:[#allocation9] sm:$0xf]
        %v1944 = vld [vmem:[#allocation9 + $0x4] sm:$0xf]
        %v1945 = vld [vmem:[#allocation9 + $0x8] sm:$0xf]
        %v1946 = vld [vmem:[#allocation9 + $0xc] sm:$0xf]
        %v1947 = vld [vmem:[#allocation9 + $0x10] sm:$0xf]
        %v1948 = vld [vmem:[#allocation9 + $0x14] sm:$0xf]
        %v1949 = vld [vmem:[#allocation9 + $0x18] sm:$0xf]
        %v1950 = vld [vmem:[#allocation9 + $0x1c] sm:$0xf]
        %v1951 = vld [vmem:[#allocation9 + $0x20] sm:$0xf]
        %v1952 = vld [vmem:[#allocation9 + $0x24] sm:$0xf]
        %v1953 = vld [vmem:[#allocation9 + $0x28] sm:$0xf]
        %v1954 = vld [vmem:[#allocation9 + $0x2c] sm:$0xf]
        %v1955 = vld [vmem:[#allocation9 + $0x30] sm:$0xf]
        %v1956 = vld [vmem:[#allocation9 + $0x34] sm:$0xf]
        %v1957 = vld [vmem:[#allocation9 + $0x38] sm:$0xf]
        %v1958 = vld [vmem:[#allocation9 + $0x3c] sm:$0xf]
        %v1959 = vld [vmem:[%s7] sm:$0x1]
        %v1961 = vlaneseq
        %v1962 = vshrl.u32 %v1961, 7
        %v1963 = vsub.s32 0, %v1962
        %v1964 = vrot.slane %v1959, %v1963
        %v1982 = vunpack.c.l.b16 %v1943
        %v1983 = vunpack.c.l.b16 %v1944
        %v1984 = vunpack.c.l.b16 %v1945
        %v1985 = vunpack.c.l.b16 %v1946
        %v1986 = vunpack.c.l.b16 %v1947
        %v1987 = vunpack.c.l.b16 %v1948
        %v1988 = vunpack.c.l.b16 %v1949
        %v1989 = vunpack.c.l.b16 %v1950
        %v1990 = vunpack.c.l.b16 %v1951
        %v1991 = vunpack.c.l.b16 %v1952
        %v1992 = vunpack.c.l.b16 %v1953
        %v1993 = vunpack.c.l.b16 %v1954
        %v1994 = vunpack.c.l.b16 %v1955
        %v1995 = vunpack.c.l.b16 %v1956
        %v1996 = vunpack.c.l.b16 %v1957
        %v1997 = vunpack.c.l.b16 %v1958
        %v1998 = vpack.c.b16 %v1983, %v1982
        %v1999 = vpack.c.b16 %v1985, %v1984
        %v2000 = vpack.c.b16 %v1987, %v1986
        %v2001 = vpack.c.b16 %v1989, %v1988
        %v2002 = vpack.c.b16 %v1991, %v1990
        %v2003 = vpack.c.b16 %v1993, %v1992
        %v2004 = vpack.c.b16 %v1995, %v1994
        %v2005 = vpack.c.b16 %v1997, %v1996
        %2014 = vmatprep.subr.bf16.mxu0 0
        %2015 = vmatpush1.bf16.msra.mxu0 %v1998
        %2016 = vmatprep.subr.bf16.mxu0 0
        %2017 = vmatpush1.bf16.msra.mxu0 %v1999
        %2018 = vmatprep.subr.bf16.mxu0 0
        %2019 = vmatpush1.bf16.msra.mxu0 %v2000
        %2020 = vmatprep.subr.bf16.mxu0 0
        %2021 = vmatpush1.bf16.msra.mxu0 %v2001
        %2022 = vmatprep.subr.bf16.mxu0 0
        %2023 = vmatpush1.bf16.msra.mxu0 %v2002
        %2024 = vmatprep.subr.bf16.mxu0 0
        %2025 = vmatpush1.bf16.msra.mxu0 %v2003
        %2026 = vmatprep.subr.bf16.mxu0 0
        %2027 = vmatpush1.bf16.msra.mxu0 %v2004
        %2028 = vmatprep.subr.bf16.mxu0 0
        %2029 = vmatpush1.bf16.msra.mxu0 %v2005
        %2030 = vmatprep.subr.bf16.mxu0 0
        %2031 = vmatpush1.bf16.msra.mxu0 0
        %2032 = vmatprep.subr.bf16.mxu0 0
        %2033 = vmatpush1.bf16.msra.mxu0 0
        %2034 = vmatprep.subr.bf16.mxu0 0
        %2035 = vmatpush1.bf16.msra.mxu0 0
        %2036 = vmatprep.subr.bf16.mxu0 0
        %2037 = vmatpush1.bf16.msra.mxu0 0
        %2038 = vmatprep.subr.bf16.mxu0 0
        %2039 = vmatpush1.bf16.msra.mxu0 0
        %2040 = vmatprep.subr.bf16.mxu0 0
        %2041 = vmatpush1.bf16.msra.mxu0 0
        %2042 = vmatprep.subr.bf16.mxu0 0
        %2043 = vmatpush1.bf16.msra.mxu0 0
        %2044 = vmatprep.subr.bf16.mxu0 0
        %2045 = vmatpush1.bf16.msra.mxu0 0
        %2046 = vmatprep.mubr.bf16.mxu0 0
        %2047 = vmatmul.mubr.bf16.gmra.mrb[0].mxu0 %v1935
        %v2048 = vpop.f32.mrb[0].mxu0
        %v2049 = vadd.f32 %v1964, %v2048
        %v2050 = vpop.f32.mrb[0].mxu0
        %v2051 = vpop.f32.mrb[0].mxu0
        %v2052 = vadd.f32 %v1964, %v2051
        %v2053 = vpop.f32.mrb[0].mxu0
        %2054 = vmatprep.mubr.bf16.mxu0 0
        %2055 = vmatmul.mubr.bf16.gmra.mrb[0].mxu0 %v1936
        %v2056 = vpop.f32.mrb[0].mxu0
        %v2057 = vadd.f32 %v1964, %v2056
        %v2058 = vpop.f32.mrb[0].mxu0
        %v2059 = vpop.f32.mrb[0].mxu0
        %v2060 = vadd.f32 %v1964, %v2059
        %v2061 = vpop.f32.mrb[0].mxu0
        %2062 = vmatprep.mubr.bf16.mxu0 0
        %2063 = vmatmul.mubr.bf16.gmra.mrb[0].mxu0 %v1937
        %v2064 = vpop.f32.mrb[0].mxu0
        %v2065 = vadd.f32 %v1964, %v2064
        %v2066 = vpop.f32.mrb[0].mxu0
        %v2067 = vpop.f32.mrb[0].mxu0
        %v2068 = vadd.f32 %v1964, %v2067
        %v2069 = vpop.f32.mrb[0].mxu0
        %2070 = vmatprep.mubr.bf16.mxu0 0
        %2071 = vmatmul.mubr.bf16.gmra.mrb[0].mxu0 %v1938
        %v2072 = vpop.f32.mrb[0].mxu0
        %v2073 = vadd.f32 %v1964, %v2072
        %v2074 = vpop.f32.mrb[0].mxu0
        %v2075 = vpop.f32.mrb[0].mxu0
        %v2076 = vadd.f32 %v1964, %v2075
        %v2077 = vpop.f32.mrb[0].mxu0
        %2078 = vmatprep.mubr.bf16.mxu0 0
        %2079 = vmatmul.mubr.bf16.gmra.mrb[0].mxu0 %v1939
        %v2080 = vpop.f32.mrb[0].mxu0
        %v2081 = vadd.f32 %v1964, %v2080
        %v2082 = vpop.f32.mrb[0].mxu0
        %v2083 = vpop.f32.mrb[0].mxu0
        %v2084 = vadd.f32 %v1964, %v2083
        %v2085 = vpop.f32.mrb[0].mxu0
        %2086 = vmatprep.mubr.bf16.mxu0 0
        %2087 = vmatmul.mubr.bf16.gmra.mrb[0].mxu0 %v1940
        %v2088 = vpop.f32.mrb[0].mxu0
        %v2089 = vadd.f32 %v1964, %v2088
        %v2090 = vpop.f32.mrb[0].mxu0
        %v2091 = vpop.f32.mrb[0].mxu0
        %v2092 = vadd.f32 %v1964, %v2091
        %v2093 = vpop.f32.mrb[0].mxu0
        %2094 = vmatprep.mubr.bf16.mxu0 0
        %2095 = vmatmul.mubr.bf16.gmra.mrb[0].mxu0 %v1941
        %v2096 = vpop.f32.mrb[0].mxu0
        %v2097 = vadd.f32 %v1964, %v2096
        %v2098 = vpop.f32.mrb[0].mxu0
        %v2099 = vpop.f32.mrb[0].mxu0
        %v2100 = vadd.f32 %v1964, %v2099
        %v2101 = vpop.f32.mrb[0].mxu0
        %2102 = vmatprep.mubr.bf16.mxu0 0
        %2103 = vmatmul.mubr.bf16.gmra.mrb[0].mxu0 %v1942
        %v2104 = vpop.f32.mrb[0].mxu0
        %v2105 = vadd.f32 %v1964, %v2104
        %v2106 = vpop.f32.mrb[0].mxu0
        %v2107 = vpop.f32.mrb[0].mxu0
        %v2108 = vadd.f32 %v1964, %v2107
        %v2109 = vpop.f32.mrb[0].mxu0
        %2110 = vdwg.mxu0
        %s2111 = scalar_lea.vmem %s337, %s1439 [#allocation3]
        %v2112 = vld [vmem:[%s2111] sm:$0xff]
        %v2113 = vld [vmem:[%s2111 + $0x8] sm:$0xff]
        %v2114 = vld [vmem:[%s2111 + $0x10] sm:$0xff]
        %v2115 = vld [vmem:[%s2111 + $0x18] sm:$0xff]
        %v2116 = vld [vmem:[%s2111 + $0x20] sm:$0xff]
        %v2117 = vld [vmem:[%s2111 + $0x28] sm:$0xff]
        %v2118 = vld [vmem:[%s2111 + $0x30] sm:$0xff]
        %v2119 = vld [vmem:[%s2111 + $0x38] sm:$0xff]
        %v2120 = vld [vmem:[%s2111 + $0x40] sm:$0xff]
        %v2121 = vld [vmem:[%s2111 + $0x48] sm:$0xff]
        %v2122 = vld [vmem:[%s2111 + $0x50] sm:$0xff]
        %v2123 = vld [vmem:[%s2111 + $0x58] sm:$0xff]
        %v2124 = vld [vmem:[%s2111 + $0x60] sm:$0xff]
        %v2125 = vld [vmem:[%s2111 + $0x68] sm:$0xff]
        %v2126 = vld [vmem:[%s2111 + $0x70] sm:$0xff]
        %v2127 = vld [vmem:[%s2111 + $0x78] sm:$0xff]
        %v2128 = vadd.f32 %v2112, %v2049
        %v2129 = vadd.f32 %v2113, %v2052
        %v2130 = vadd.f32 %v2114, %v2057
        %v2131 = vadd.f32 %v2115, %v2060
        %v2132 = vadd.f32 %v2116, %v2065
        %v2133 = vadd.f32 %v2117, %v2068
        %v2134 = vadd.f32 %v2118, %v2073
        %v2135 = vadd.f32 %v2119, %v2076
        %v2136 = vadd.f32 %v2120, %v2081
        %v2137 = vadd.f32 %v2121, %v2084
        %v2138 = vadd.f32 %v2122, %v2089
        %v2139 = vadd.f32 %v2123, %v2092
        %v2140 = vadd.f32 %v2124, %v2097
        %v2141 = vadd.f32 %v2125, %v2100
        %v2142 = vadd.f32 %v2126, %v2105
        %v2143 = vadd.f32 %v2127, %v2108
        %2144 = vst [vmem:[%s381] sm:$0xff] %v2128
        %2145 = vst [vmem:[%s381 + $0x8] sm:$0xff] %v2129
        %2146 = vst [vmem:[%s381 + $0x10] sm:$0xff] %v2130
        %2147 = vst [vmem:[%s381 + $0x18] sm:$0xff] %v2131
        %2148 = vst [vmem:[%s381 + $0x20] sm:$0xff] %v2132
        %2149 = vst [vmem:[%s381 + $0x28] sm:$0xff] %v2133
        %2150 = vst [vmem:[%s381 + $0x30] sm:$0xff] %v2134
        %2151 = vst [vmem:[%s381 + $0x38] sm:$0xff] %v2135
        %2152 = vst [vmem:[%s381 + $0x40] sm:$0xff] %v2136
        %2153 = vst [vmem:[%s381 + $0x48] sm:$0xff] %v2137
        %2154 = vst [vmem:[%s381 + $0x50] sm:$0xff] %v2138
        %2155 = vst [vmem:[%s381 + $0x58] sm:$0xff] %v2139
        %2156 = vst [vmem:[%s381 + $0x60] sm:$0xff] %v2140
        %2157 = vst [vmem:[%s381 + $0x68] sm:$0xff] %v2141
        %2158 = vst [vmem:[%s381 + $0x70] sm:$0xff] %v2142
        %2159 = vst [vmem:[%s381 + $0x78] sm:$0xff] %v2143
        %s2160 = sand.u32 %s222, 1
        %s2161 = scalar_lea.sflag [#allocation5], %s2160
        %s2162 = sand.u32 %s222, 1
        %s2163 = smul.addr %s2162, 128
        %s2164 = scalar_lea.vmem [#allocation11], %s2163
        // Predicated region
        $region73: #{tpu_custom_call.1} parent=51 // pred_check
          %p2165 = pneg %p232
        $region74: #{tpu_custom_call.1} parent=51 // pred_check_branch
          %2167 = sbr.rel (%p2165) target = $region76
        $region75: #{tpu_custom_call.1} parent=51 // pred_region
          %s2168 = smul.u32 16, %s32
          %s2170 = ssub.s32 2048, 2048
          %2171 = vsyncadd %s2161, %s2170
          %s2172 = smul.addr %s31, 32
          %s2173 = sadd.s32 %s2168, %s2172
          %s2174 = smul.addr %s2173, 128
          %s2175 = scalar_lea.hbm %s8, %s2174
          %s2176 = sshll.u32 %s2164, 4
          %s2177 = int_to_ptr.vmem [resolvable:$true] %s2176
          %2182 = dma.vmem_to_hbm [thread:$0]  %s2177, 2048, %s2175, %s2161, 128, 128, 8
        $region76: #{tpu_custom_call.1} parent=51 // pred_fallthru
          _
      $region52: #{tpu_custom_call.1} parent=5 // pred_fallthru
        _
      %p2183 = scmp.le.s32.totalorder 2, %s22
      // Predicated region
      $region77: #{tpu_custom_call.1} parent=5 // pred_check
        %p2184 = pneg %p2183
      $region78: #{tpu_custom_call.1} parent=5 // pred_check_branch
        %2186 = sbr.rel (%p2184) target = $region80
      $region79: #{tpu_custom_call.1} parent=5 // pred_region
        %s2187 = ssub.s32 %s22, 2
        // Predicated region
        $region81: #{tpu_custom_call.1} parent=79 // pred_check
          %p2188 = pneg %p238
        $region82: #{tpu_custom_call.1} parent=79 // pred_check_branch
          %2190 = sbr.rel (%p2188) target = $region84
        $region83: #{tpu_custom_call.1} parent=79 // pred_region
          %s2191 = sand.u32 %s223, 1
          %s2192 = scalar_lea.sflag [#allocation5], %s2191
          %s2193 = sand.u32 %s223, 1
          %s2194 = smul.addr %s2193, 128
          %s2195 = scalar_lea.vmem [#allocation11], %s2194
          %2196 = dma.done %s2192, 2048
        $region84: #{tpu_custom_call.1} parent=79 // pred_fallthru
          _
      $region80: #{tpu_custom_call.1} parent=5 // pred_fallthru
        _
    $region6: #{tpu_custom_call.1} parent=1 // loop_footer
      %s26 = sadd.s32 1, %s22
    $region7: #{tpu_custom_call.1} parent=1 // loop_footer_branch
      %21 = sbr.rel target = $region3
    $region8: #{tpu_custom_call.1} parent=1 // loop_exit
      _
    %2197 = vsyncpa [#allocation4], 1
    %s2198 = scalar_lea.sflag [#allocation4], 1
    %2199 = vsyncpa %s2198, 1
    %2200 = vsyncpa [#allocation7], 1
    %2201 = vsyncpa [#allocation10], 1
    %2202 = vsyncpa [#allocation5], 1
    %s2203 = scalar_lea.sflag [#allocation5], 1
    %2204 = vsyncpa %s2203, 1

</llo_original>
